<compile_context>
chip_gen: v5e
topology: v5e:2x2
jax: 0.10.0
libtpu: 0.0.40
codegen_flags: <defaults>
</compile_context>

<pallas_src>
import functools
import math

import jax
import jax.numpy as jnp
from jax.experimental import pallas as pl
from jax.experimental.pallas import tpu as pltpu

BN_EPS = 1e-5


# ---------------------------------------------------------------------------
# Kernels
# ---------------------------------------------------------------------------
def _linear_kernel(x_ref, w_ref, fw_ref):
    """fw = x @ w   (bf16 MXU inputs, f32 accumulation, bf16 output)."""
    fw_ref[...] = jnp.dot(
        x_ref[...].astype(jnp.bfloat16), w_ref[...],
        preferred_element_type=jnp.float32).astype(jnp.bfloat16)


def _bn_relu_linear_kernel(z_ref, scale_ref, shift_ref, w_ref, fw_ref):
    """fw = relu(z*scale + shift) @ w — fused BN affine + ReLU + linear (1 pass)."""
    h = jnp.maximum(z_ref[...] * scale_ref[...] + shift_ref[...], 0.0)
    fw_ref[...] = jnp.dot(
        h.astype(jnp.bfloat16), w_ref[...],
        preferred_element_type=jnp.float32).astype(jnp.bfloat16)


def _aggregate_kernel(adj_ref, fw_ref, b_ref, z_ref, s_ref, ss_ref, acc_ref,
                      *, n_rows, tm, n_kblocks):
    """z[i] = sum_k adj[i,k] @ fw[k] + b, plus per-row-block partial BN sums."""
    # NOTE: all pl.program_id calls live at the top level of the kernel body;
    # calling them inside pl.when bodies breaks lowering/interpretation.
    i = pl.program_id(0)
    k = pl.program_id(1)
    row = jax.lax.broadcasted_iota(jnp.int32, (tm, 1), 0) + i * tm
    row_ok = row < n_rows   # mask rows that are zero-padding (n_rows static)

    @pl.when(k == 0)
    def _init():
        acc_ref[...] = jnp.zeros_like(acc_ref)

    acc_ref[...] += jnp.dot(adj_ref[...], fw_ref[...],
                            preferred_element_type=jnp.float32)

    @pl.when(k == n_kblocks - 1)
    def _finalize():
        z = acc_ref[...] + b_ref[...]
        z_ref[...] = z
        zm = jnp.where(row_ok, z, 0.0)
        s_ref[...] = jnp.sum(zm, axis=0, keepdims=True)[None]        # (1,1,H)
        ss_ref[...] = jnp.sum(zm * zm, axis=0, keepdims=True)[None]  # (1,1,H)


def _readout_kernel(z_ref, scale_ref, shift_ref, w3_ref, b3_ref, out_ref,
                    acc_ref, *, n_rows, tm, n_iblocks):
    """out = mean_rows(relu(z*scale+shift)) @ w3 + b3 (lane-padded output)."""
    i = pl.program_id(0)
    row = jax.lax.broadcasted_iota(jnp.int32, (tm, 1), 0) + i * tm

    @pl.when(i == 0)
    def _init():
        acc_ref[...] = jnp.zeros_like(acc_ref)

    h = jnp.maximum(z_ref[...] * scale_ref[...] + shift_ref[...], 0.0)
    h = jnp.where(row < n_rows, h, 0.0)
    # broadcast the (1,H) block-sum into all 8 accumulator rows (they stay equal)
    acc_ref[...] += jnp.sum(h, axis=0, keepdims=True)

    @pl.when(i == n_iblocks - 1)
    def _final():
        pooled = acc_ref[...] * (1.0 / n_rows)          # (8, H), rows identical
        out_ref[...] = (jnp.dot(pooled, w3_ref[...],
                                preferred_element_type=jnp.float32)
                        + b3_ref[...])


# ---------------------------------------------------------------------------
# Tiling helpers
# ---------------------------------------------------------------------------
def _round_up(a, m):
    return ((a + m - 1) // m) * m


def _pick_tiles(n):
    """Return (n_pad, row_tile, k_tile); conservative for v7x's 64 MiB VMEM."""
    if n <= 512:
        p = _round_up(n, 8)
        return p, p, p                       # single block: tiny graphs
    if n <= 2048:
        return _round_up(n, 256), 256, 256   # MXU-native 256-wide tiles
    return _round_up(n, 512), 256, 512


def _vmem_limit_bytes(tm, tk, width):
    # double-buffered bf16 inputs + f32 outputs + f32 accumulator, 2x headroom
    inp = 2 * (tm * tk * 2 + tk * width * 2 + width * 4)
    out = 2 * (tm * width * 4 + 2 * width * 4)
    acc = tm * width * 4
    est = 2 * (inp + out + acc)
    return int(min(max(est, 32 << 20), 56 << 20))


# ---------------------------------------------------------------------------
# Forward wrapper
# ---------------------------------------------------------------------------
def gnn_forward(x, adj, params, *, row_tile=None, k_tile=None):
    """x: (N, num_features) f32, adj: (N, N) f32.  Returns (output_dim,) f32."""
    (w1, b1, g1, be1, w2, b2, g2, be2, w3, b3) = params
    n, f = x.shape
    hid = w1.shape[1]
    o = w3.shape[1]

    n_pad, tm, tk = _pick_tiles(n)
    if row_tile is not None:
        tm = int(row_tile)
    if k_tile is not None:
        tk = int(k_tile)
    n_pad = _round_up(n, math.lcm(tm, tk))
    o_pad = _round_up(o, 128)

    vmem = _vmem_limit_bytes(tm, tk, max(hid, f))
    cp_par1 = pltpu.CompilerParams(dimension_semantics=("parallel",),
                                   vmem_limit_bytes=vmem)
    cp_seq1 = pltpu.CompilerParams(dimension_semantics=("arbitrary",),
                                   vmem_limit_bytes=vmem)
    cp_agg = pltpu.CompilerParams(dimension_semantics=("parallel", "arbitrary"),
                                  vmem_limit_bytes=vmem)

    # --- padding & dtype prep (bf16 MXU operands, f32 elsewhere) ---
    adj_b = jnp.pad(adj, ((0, n_pad - n), (0, n_pad - n))).astype(jnp.bfloat16)
    x_p = jnp.pad(x, ((0, n_pad - n), (0, 0)))
    w1_b = w1.astype(jnp.bfloat16)
    w2_b = w2.astype(jnp.bfloat16)
    w3_p = jnp.pad(w3, ((0, 0), (0, o_pad - o)))
    b3_p = jnp.pad(b3, ((0, 0), (0, o_pad - o)))

    n_i = n_pad // tm
    n_k = n_pad // tk

    def transform(kernel, inputs, in_specs):
        return pl.pallas_call(
            kernel,
            out_shape=jax.ShapeDtypeStruct((n_pad, hid), jnp.bfloat16),
            grid_spec=pltpu.PrefetchScalarGridSpec(
                num_scalar_prefetch=0,
                grid=(n_i,),
                in_specs=in_specs,
                out_specs=pl.BlockSpec((tm, hid), lambda i: (i, 0))),
            compiler_params=cp_par1,
        )(*inputs)

    def aggregate(fw, bias):
        flops = 2 * n_pad * n_pad * hid
        bytes_accessed = (adj_b.size * 2 + fw.size * 2
                          + n_pad * hid * 4 + (2 * n_i + 1) * hid * 4)
        kern = functools.partial(_aggregate_kernel, n_rows=n, tm=tm,
                                 n_kblocks=n_k)
        return pl.pallas_call(
            kern,
            out_shape=(jax.ShapeDtypeStruct((n_pad, hid), jnp.float32),
                       jax.ShapeDtypeStruct((n_i, 1, hid), jnp.float32),
                       jax.ShapeDtypeStruct((n_i, 1, hid), jnp.float32)),
            grid_spec=pltpu.PrefetchScalarGridSpec(
                num_scalar_prefetch=0,
                grid=(n_i, n_k),
                in_specs=[pl.BlockSpec((tm, tk), lambda i, k: (i, k)),
                          pl.BlockSpec((tk, hid), lambda i, k: (k, 0)),
                          pl.BlockSpec((1, hid), lambda i, k: (0, 0))],
                out_specs=[pl.BlockSpec((tm, hid), lambda i, k: (i, 0)),
                           pl.BlockSpec((1, 1, hid), lambda i, k: (i, 0, 0)),
                           pl.BlockSpec((1, 1, hid), lambda i, k: (i, 0, 0))],
                scratch_shapes=[pltpu.VMEM((tm, hid), jnp.float32)]),
            compiler_params=cp_agg,
            cost_estimate=pl.CostEstimate(flops=flops, transcendentals=0,
                                          bytes_accessed=bytes_accessed),
        )(adj_b, fw, bias)

    def bn_affine(s_part, ss_part, gamma, beta):
        # tiny O(H) reduction of per-row-block partial sums (plain XLA ops)
        s = jnp.sum(s_part, axis=0)      # (1, H)
        ss = jnp.sum(ss_part, axis=0)    # (1, H)
        mu = s / n
        var = jnp.maximum(ss / n - mu * mu, 0.0)
        scale = gamma * jax.lax.rsqrt(var + BN_EPS)
        shift = beta - mu * scale
        return scale, shift

    # ---- layer 1:  z1 = adj @ (x @ w1) + b1,  batch stats of z1 ----
    fw1 = transform(_linear_kernel, (x_p, w1_b),
                    [pl.BlockSpec((tm, f), lambda i: (i, 0)),
                     pl.BlockSpec((f, hid), lambda i: (0, 0))])
    z1, s1, ss1 = aggregate(fw1, b1)
    scale1, shift1 = bn_affine(s1, ss1, g1, be1)

    # ---- layer 2:  z2 = adj @ (relu(bn(z1)) @ w2) + b2 ----
    fw2 = transform(_bn_relu_linear_kernel, (z1, scale1, shift1, w2_b),
                    [pl.BlockSpec((tm, hid), lambda i: (i, 0)),
                     pl.BlockSpec((1, hid), lambda i: (0, 0)),
                     pl.BlockSpec((1, hid), lambda i: (0, 0)),
                     pl.BlockSpec((hid, hid), lambda i: (0, 0))])
    z2, s2, ss2 = aggregate(fw2, b2)
    scale2, shift2 = bn_affine(s2, ss2, g2, be2)

    # ---- readout:  out = mean_rows(relu(bn(z2))) @ w3 + b3 ----
    kern = functools.partial(_readout_kernel, n_rows=n, tm=tm, n_iblocks=n_i)
    out = pl.pallas_call(
        kern,
        out_shape=jax.ShapeDtypeStruct((8, o_pad), jnp.float32),
        grid_spec=pltpu.PrefetchScalarGridSpec(
            num_scalar_prefetch=0,
            grid=(n_i,),
            in_specs=[pl.BlockSpec((tm, hid), lambda i: (i, 0)),
                      pl.BlockSpec((1, hid), lambda i: (0, 0)),
                      pl.BlockSpec((1, hid), lambda i: (0, 0)),
                      pl.BlockSpec((hid, o_pad), lambda i: (0, 0)),
                      pl.BlockSpec((1, o_pad), lambda i: (0, 0))],
            out_specs=pl.BlockSpec((8, o_pad), lambda i: (0, 0)),
            scratch_shapes=[pltpu.VMEM((8, hid), jnp.float32)]),
        compiler_params=cp_seq1,
    )(z2, scale2, shift2, w3_p, b3_p)

    return out[0, :o]


# ---------------------------------------------------------------------------
# Params / reference / test
# ---------------------------------------------------------------------------
def init_params(key, num_features, hidden_dim, output_dim):
    """Synthetic init. Linear weights stored (in, out); BN weight=1, bias=0."""
    k1, k2, k3, k4, k5, k6 = jax.random.split(key, 6)
    w1 = 0.1 * jax.random.normal(k1, (num_features, hidden_dim), jnp.float32)
    b1 = 0.1 * jax.random.normal(k2, (1, hidden_dim), jnp.float32)
    w2 = 0.1 * jax.random.normal(k3, (hidden_dim, hidden_dim), jnp.float32)
    b2 = 0.1 * jax.random.normal(k4, (1, hidden_dim), jnp.float32)
    w3 = 0.1 * jax.random.normal(k5, (hidden_dim, output_dim), jnp.float32)
    b3 = 0.1 * jax.random.normal(k6, (1, output_dim), jnp.float32)
    g1 = jnp.ones((1, hidden_dim), jnp.float32)
    be1 = jnp.zeros((1, hidden_dim), jnp.float32)
    g2 = jnp.ones((1, hidden_dim), jnp.float32)
    be2 = jnp.zeros((1, hidden_dim), jnp.float32)
    return (w1, b1, g1, be1, w2, b2, g2, be2, w3, b3)


def _reference(x, adj, params):
    """Pure-JAX f32 reference of the PyTorch forward (training-mode BN)."""
    (w1, b1, g1, be1, w2, b2, g2, be2, w3, b3) = params

    def bn(h, g, be):
        mu = jnp.mean(h, axis=0, keepdims=True)
        var = jnp.mean((h - mu) ** 2, axis=0, keepdims=True)
        return (h - mu) / jnp.sqrt(var + BN_EPS) * g + be

    h = adj @ x
    h = jax.nn.relu(bn(h @ w1 + b1, g1, be1))
    h = adj @ h
    h = jax.nn.relu(bn(h @ w2 + b2, g2, be2))
    pooled = jnp.mean(h, axis=0)
    return pooled @ w3 + b3[0]


if __name__ == "__main__":
    # Small but non-trivial: N=256 nodes with forced 128-wide tiles so the
    # tiled (2x2 grid) accumulation / stats / readout paths are exercised.
    N, NUM_FEATURES, HIDDEN, OUT = 256, 16, 32, 8

    key = jax.random.PRNGKey(0)
    kx, ka, kp = jax.random.split(key, 3)

    x = jax.random.normal(kx, (N, NUM_FEATURES), jnp.float32)
    a = jax.random.uniform(ka, (N, N), jnp.float32)
    adj = ((a + a.T) * 0.5 > 0.8).astype(jnp.float32) + jnp.eye(N, dtype=jnp.float32)
    adj = adj / jnp.sum(adj, axis=1, keepdims=True)

    params = init_params(kp, NUM_FEATURES, HIDDEN, OUT)

    fwd = jax.jit(functools.partial(gnn_forward, row_tile=128, k_tile=128))
    out = fwd(x, adj, params)
    jax.block_until_ready(out)

    ref = _reference(x, adj, params)
    assert out.shape == (OUT,)
    # bf16 MXU operands (f32 accumulation) => compare to f32 ref with bf16-level tolerance
    assert jnp.allclose(out, ref, atol=5e-2, rtol=5e-2), (
        float(jnp.max(jnp.abs(out - ref))), out, ref)

    print("KERNEL_OK")
</pallas_src>

<mosaic_0001>
module attributes {stable_mosaic.version = 11 : i64} {
  func.func @_linear_kernel(%arg0: i32, %arg1: memref<128x16xf32, #tpu.memory_space<vmem>>, %arg2: memref<16x32xbf16, #tpu.memory_space<vmem>>, %arg3: memref<128x32xbf16, #tpu.memory_space<vmem>>) attributes {dimension_semantics = [#tpu.dimension_semantics<parallel>], iteration_bounds = array<i64: 2>, scalar_prefetch = 0 : i64, scratch_operands = 0 : i64, tpu.core_type = #tpu.core_type<tc>, window_params = [{transform_indices = @transform_0, window_bounds = array<i64: 128, 16>}, {pipeline_mode = #tpu.pipeline_mode<synchronous>, transform_indices = @transform_1, window_bounds = array<i64: 16, 32>}, {transform_indices = @transform_2, window_bounds = array<i64: 128, 32>}]} {
    %c0 = arith.constant 0 : index
    %c0_0 = arith.constant 0 : index
    %0 = vector.load %arg1[%c0, %c0_0] : memref<128x16xf32, #tpu.memory_space<vmem>>, vector<128x16xf32>
    %1 = arith.truncf %0 : vector<128x16xf32> to vector<128x16xbf16>
    %c0_1 = arith.constant 0 : index
    %c0_2 = arith.constant 0 : index
    %2 = vector.load %arg2[%c0_1, %c0_2] : memref<16x32xbf16, #tpu.memory_space<vmem>>, vector<16x32xbf16>
    %cst = arith.constant dense<0.000000e+00> : vector<128x32xf32>
    %3 = tpu.matmul %1, %2, %cst {dimension_numbers = #tpu.dot_dimension_numbers<[1], [0], [0], [1], [0, 0, 1, 1], [], []>} : vector<128x16xbf16>, vector<16x32xbf16>, vector<128x32xf32> -> vector<128x32xf32>
    %4 = arith.truncf %3 : vector<128x32xf32> to vector<128x32xbf16>
    %c0_3 = arith.constant 0 : index
    %c0_4 = arith.constant 0 : index
    %5 = vector.load %arg3[%c0_3, %c0_4] : memref<128x32xbf16, #tpu.memory_space<vmem>>, vector<128x32xbf16>
    tpu.vector_store %arg3[%c0_3, %c0_4], %4 {strides = array<i32>} : memref<128x32xbf16, #tpu.memory_space<vmem>>, vector<128x32xbf16>,
    return
  }
  func.func @transform_0(%arg0: i32) -> (i32, i32) {
    %c0_i32 = arith.constant 0 : i32
    %c0_i32_0 = arith.constant 0 : i32
    return %arg0, %c0_i32 : i32, i32
  }
  func.func @transform_1(%arg0: i32) -> (i32, i32) {
    %c0_i32 = arith.constant 0 : i32
    %c0_i32_0 = arith.constant 0 : i32
    %c0_i32_1 = arith.constant 0 : i32
    return %c0_i32, %c0_i32_0 : i32, i32
  }
  func.func @transform_2(%arg0: i32) -> (i32, i32) {
    %c0_i32 = arith.constant 0 : i32
    %c0_i32_0 = arith.constant 0 : i32
    return %arg0, %c0_i32 : i32, i32
  }
}

module attributes {stable_mosaic.version = 11 : i64} {
  func.func @_aggregate_kernel(%arg0: i32, %arg1: i32, %arg2: memref<128x128xbf16, #tpu.memory_space<vmem>>, %arg3: memref<128x32xbf16, #tpu.memory_space<vmem>>, %arg4: memref<1x32xf32, #tpu.memory_space<vmem>>, %arg5: memref<128x32xf32, #tpu.memory_space<vmem>>, %arg6: memref<1x1x32xf32, #tpu.memory_space<vmem>>, %arg7: memref<1x1x32xf32, #tpu.memory_space<vmem>>, %arg8: memref<128x32xf32, #tpu.memory_space<vmem>>) attributes {dimension_semantics = [#tpu.dimension_semantics<parallel>, #tpu.dimension_semantics<arbitrary>], iteration_bounds = array<i64: 2, 2>, scalar_prefetch = 0 : i64, scratch_operands = 1 : i64, tpu.core_type = #tpu.core_type<tc>, window_params = [{transform_indices = @transform_0, window_bounds = array<i64: 128, 128>}, {transform_indices = @transform_1, window_bounds = array<i64: 128, 32>}, {pipeline_mode = #tpu.pipeline_mode<synchronous>, transform_indices = @transform_2, window_bounds = array<i64: 1, 32>}, {transform_indices = @transform_3, window_bounds = array<i64: 128, 32>}, {transform_indices = @transform_4, window_bounds = array<i64: 1, 1, 32>}, {transform_indices = @transform_5, window_bounds = array<i64: 1, 1, 32>}]} {
    %0 = tpu.iota {dimensions = array<i32: 0>} : vector<128x1xi32>
    %c128_i32 = arith.constant 128 : i32
    %1 = arith.muli %arg0, %c128_i32 : i32
    %2 = vector.broadcast %1 : i32 to vector<128x1xi32>
    %3 = arith.addi %0, %2 : vector<128x1xi32>
    %c256_i32 = arith.constant 256 : i32
    %4 = vector.broadcast %c256_i32 : i32 to vector<128x1xi32>
    %5 = arith.cmpi slt, %3, %4 : vector<128x1xi32>
    %c0_i32 = arith.constant 0 : i32
    %6 = arith.cmpi eq, %arg1, %c0_i32 : i32
    %7 = arith.extui %6 : i1 to i32
    %c0_i32_0 = arith.constant 0 : i32
    %8 = arith.cmpi ne, %7, %c0_i32_0 : i32
    scf.if %8 {
      %cst_9 = arith.constant 0.000000e+00 : f32
      %18 = vector.broadcast %cst_9 : f32 to vector<128x32xf32>
      %c0_10 = arith.constant 0 : index
      %c0_11 = arith.constant 0 : index
      %19 = vector.load %arg8[%c0_10, %c0_11] : memref<128x32xf32, #tpu.memory_space<vmem>>, vector<128x32xf32>
      tpu.vector_store %arg8[%c0_10, %c0_11], %18 {strides = array<i32>} : memref<128x32xf32, #tpu.memory_space<vmem>>, vector<128x32xf32>,
    } else {
    }
    %c0 = arith.constant 0 : index
    %c0_1 = arith.constant 0 : index
    %9 = vector.load %arg8[%c0, %c0_1] : memref<128x32xf32, #tpu.memory_space<vmem>>, vector<128x32xf32>
    %c0_2 = arith.constant 0 : index
    %c0_3 = arith.constant 0 : index
    %10 = vector.load %arg2[%c0_2, %c0_3] : memref<128x128xbf16, #tpu.memory_space<vmem>>, vector<128x128xbf16>
    %c0_4 = arith.constant 0 : index
    %c0_5 = arith.constant 0 : index
    %11 = vector.load %arg3[%c0_4, %c0_5] : memref<128x32xbf16, #tpu.memory_space<vmem>>, vector<128x32xbf16>
    %cst = arith.constant dense<0.000000e+00> : vector<128x32xf32>
    %12 = tpu.matmul %10, %11, %cst {dimension_numbers = #tpu.dot_dimension_numbers<[1], [0], [0], [1], [0, 0, 1, 1], [], []>} : vector<128x128xbf16>, vector<128x32xbf16>, vector<128x32xf32> -> vector<128x32xf32>
    %13 = arith.addf %9, %12 : vector<128x32xf32>
    %c0_6 = arith.constant 0 : index
    %c0_7 = arith.constant 0 : index
    %14 = vector.load %arg8[%c0_6, %c0_7] : memref<128x32xf32, #tpu.memory_space<vmem>>, vector<128x32xf32>
    tpu.vector_store %arg8[%c0_6, %c0_7], %13 {strides = array<i32>} : memref<128x32xf32, #tpu.memory_space<vmem>>, vector<128x32xf32>,
    %c1_i32 = arith.constant 1 : i32
    %15 = arith.cmpi eq, %arg1, %c1_i32 : i32
    %16 = arith.extui %15 : i1 to i32
    %c0_i32_8 = arith.constant 0 : i32
    %17 = arith.cmpi ne, %16, %c0_i32_8 : i32
    scf.if %17 {
      %c0_9 = arith.constant 0 : index
      %c0_10 = arith.constant 0 : index
      %18 = vector.load %arg8[%c0_9, %c0_10] : memref<128x32xf32, #tpu.memory_space<vmem>>, vector<128x32xf32>
      %c0_11 = arith.constant 0 : index
      %c0_12 = arith.constant 0 : index
      %19 = vector.load %arg4[%c0_11, %c0_12] : memref<1x32xf32, #tpu.memory_space<vmem>>, vector<1x32xf32>
      %20 = vector.broadcast %19 : vector<1x32xf32> to vector<128x32xf32>
      %21 = arith.addf %18, %20 : vector<128x32xf32>
      %c0_13 = arith.constant 0 : index
      %c0_14 = arith.constant 0 : index
      %22 = vector.load %arg5[%c0_13, %c0_14] : memref<128x32xf32, #tpu.memory_space<vmem>>, vector<128x32xf32>
      tpu.vector_store %arg5[%c0_13, %c0_14], %21 {strides = array<i32>} : memref<128x32xf32, #tpu.memory_space<vmem>>, vector<128x32xf32>,
      %cst_15 = arith.constant 0.000000e+00 : f32
      %23 = vector.shape_cast %5 : vector<128x1xi1> to vector<128x1xi1>
      %24 = vector.broadcast %23 : vector<128x1xi1> to vector<128x32xi1>
      %25 = vector.broadcast %cst_15 : f32 to vector<128x32xf32>
      %26 = arith.select %24, %21, %25 : vector<128x32xi1>, vector<128x32xf32>
      %cst_16 = arith.constant dense<0.000000e+00> : vector<32xf32>
      %27 = vector.multi_reduction <add>, %26, %cst_16 [0] : vector<128x32xf32> to vector<32xf32>
      %28 = vector.shape_cast %27 : vector<32xf32> to vector<1x32xf32>
      %29 = vector.shape_cast %28 : vector<1x32xf32> to vector<1x1x32xf32>
      %c0_17 = arith.constant 0 : index
      %c0_18 = arith.constant 0 : index
      %c0_19 = arith.constant 0 : index
      %30 = vector.load %arg6[%c0_17, %c0_18, %c0_19] : memref<1x1x32xf32, #tpu.memory_space<vmem>>, vector<1x1x32xf32>
      tpu.vector_store %arg6[%c0_17, %c0_18, %c0_19], %29 {strides = array<i32>} : memref<1x1x32xf32, #tpu.memory_space<vmem>>, vector<1x1x32xf32>,
      %31 = arith.mulf %26, %26 : vector<128x32xf32>
      %cst_20 = arith.constant dense<0.000000e+00> : vector<32xf32>
      %32 = vector.multi_reduction <add>, %31, %cst_20 [0] : vector<128x32xf32> to vector<32xf32>
      %33 = vector.shape_cast %32 : vector<32xf32> to vector<1x32xf32>
      %34 = vector.shape_cast %33 : vector<1x32xf32> to vector<1x1x32xf32>
      %c0_21 = arith.constant 0 : index
      %c0_22 = arith.constant 0 : index
      %c0_23 = arith.constant 0 : index
      %35 = vector.load %arg7[%c0_21, %c0_22, %c0_23] : memref<1x1x32xf32, #tpu.memory_space<vmem>>, vector<1x1x32xf32>
      tpu.vector_store %arg7[%c0_21, %c0_22, %c0_23], %34 {strides = array<i32>} : memref<1x1x32xf32, #tpu.memory_space<vmem>>, vector<1x1x32xf32>,
    } else {
    }
    return
  }
  func.func @transform_0(%arg0: i32, %arg1: i32) -> (i32, i32) {
    %c0_i32 = arith.constant 0 : i32
    return %arg0, %arg1 : i32, i32
  }
  func.func @transform_1(%arg0: i32, %arg1: i32) -> (i32, i32) {
    %c0_i32 = arith.constant 0 : i32
    %c0_i32_0 = arith.constant 0 : i32
    return %arg1, %c0_i32 : i32, i32
  }
  func.func @transform_2(%arg0: i32, %arg1: i32) -> (i32, i32) {
    %c0_i32 = arith.constant 0 : i32
    %c0_i32_0 = arith.constant 0 : i32
    %c0_i32_1 = arith.constant 0 : i32
    return %c0_i32, %c0_i32_0 : i32, i32
  }
  func.func @transform_3(%arg0: i32, %arg1: i32) -> (i32, i32) {
    %c0_i32 = arith.constant 0 : i32
    %c0_i32_0 = arith.constant 0 : i32
    return %arg0, %c0_i32 : i32, i32
  }
  func.func @transform_4(%arg0: i32, %arg1: i32) -> (i32, i32, i32) {
    %c0_i32 = arith.constant 0 : i32
    %c0_i32_0 = arith.constant 0 : i32
    %c0_i32_1 = arith.constant 0 : i32
    return %arg0, %c0_i32, %c0_i32_0 : i32, i32, i32
  }
  func.func @transform_5(%arg0: i32, %arg1: i32) -> (i32, i32, i32) {
    %c0_i32 = arith.constant 0 : i32
    %c0_i32_0 = arith.constant 0 : i32
    %c0_i32_1 = arith.constant 0 : i32
    return %arg0, %c0_i32, %c0_i32_0 : i32, i32, i32
  }
}

module attributes {stable_mosaic.version = 11 : i64} {
  func.func @_bn_relu_linear_kernel(%arg0: i32, %arg1: memref<128x32xf32, #tpu.memory_space<vmem>>, %arg2: memref<1x32xf32, #tpu.memory_space<vmem>>, %arg3: memref<1x32xf32, #tpu.memory_space<vmem>>, %arg4: memref<32x32xbf16, #tpu.memory_space<vmem>>, %arg5: memref<128x32xbf16, #tpu.memory_space<vmem>>) attributes {dimension_semantics = [#tpu.dimension_semantics<parallel>], iteration_bounds = array<i64: 2>, scalar_prefetch = 0 : i64, scratch_operands = 0 : i64, tpu.core_type = #tpu.core_type<tc>, window_params = [{transform_indices = @transform_0, window_bounds = array<i64: 128, 32>}, {pipeline_mode = #tpu.pipeline_mode<synchronous>, transform_indices = @transform_1, window_bounds = array<i64: 1, 32>}, {pipeline_mode = #tpu.pipeline_mode<synchronous>, transform_indices = @transform_2, window_bounds = array<i64: 1, 32>}, {pipeline_mode = #tpu.pipeline_mode<synchronous>, transform_indices = @transform_3, window_bounds = array<i64: 32, 32>}, {transform_indices = @transform_4, window_bounds = array<i64: 128, 32>}]} {
    %c0 = arith.constant 0 : index
    %c0_0 = arith.constant 0 : index
    %0 = vector.load %arg1[%c0, %c0_0] : memref<128x32xf32, #tpu.memory_space<vmem>>, vector<128x32xf32>
    %c0_1 = arith.constant 0 : index
    %c0_2 = arith.constant 0 : index
    %1 = vector.load %arg2[%c0_1, %c0_2] : memref<1x32xf32, #tpu.memory_space<vmem>>, vector<1x32xf32>
    %2 = vector.broadcast %1 : vector<1x32xf32> to vector<128x32xf32>
    %3 = arith.mulf %0, %2 : vector<128x32xf32>
    %c0_3 = arith.constant 0 : index
    %c0_4 = arith.constant 0 : index
    %4 = vector.load %arg3[%c0_3, %c0_4] : memref<1x32xf32, #tpu.memory_space<vmem>>, vector<1x32xf32>
    %5 = vector.broadcast %4 : vector<1x32xf32> to vector<128x32xf32>
    %6 = arith.addf %3, %5 : vector<128x32xf32>
    %cst = arith.constant 0.000000e+00 : f32
    %7 = vector.broadcast %cst : f32 to vector<128x32xf32>
    %8 = arith.maximumf %6, %7 : vector<128x32xf32>
    %9 = arith.truncf %8 : vector<128x32xf32> to vector<128x32xbf16>
    %c0_5 = arith.constant 0 : index
    %c0_6 = arith.constant 0 : index
    %10 = vector.load %arg4[%c0_5, %c0_6] : memref<32x32xbf16, #tpu.memory_space<vmem>>, vector<32x32xbf16>
    %cst_7 = arith.constant dense<0.000000e+00> : vector<128x32xf32>
    %11 = tpu.matmul %9, %10, %cst_7 {dimension_numbers = #tpu.dot_dimension_numbers<[1], [0], [0], [1], [0, 0, 1, 1], [], []>} : vector<128x32xbf16>, vector<32x32xbf16>, vector<128x32xf32> -> vector<128x32xf32>
    %12 = arith.truncf %11 : vector<128x32xf32> to vector<128x32xbf16>
    %c0_8 = arith.constant 0 : index
    %c0_9 = arith.constant 0 : index
    %13 = vector.load %arg5[%c0_8, %c0_9] : memref<128x32xbf16, #tpu.memory_space<vmem>>, vector<128x32xbf16>
    tpu.vector_store %arg5[%c0_8, %c0_9], %12 {strides = array<i32>} : memref<128x32xbf16, #tpu.memory_space<vmem>>, vector<128x32xbf16>,
    return
  }
  func.func @transform_0(%arg0: i32) -> (i32, i32) {
    %c0_i32 = arith.constant 0 : i32
    %c0_i32_0 = arith.constant 0 : i32
    return %arg0, %c0_i32 : i32, i32
  }
  func.func @transform_1(%arg0: i32) -> (i32, i32) {
    %c0_i32 = arith.constant 0 : i32
    %c0_i32_0 = arith.constant 0 : i32
    %c0_i32_1 = arith.constant 0 : i32
    return %c0_i32, %c0_i32_0 : i32, i32
  }
  func.func @transform_2(%arg0: i32) -> (i32, i32) {
    %c0_i32 = arith.constant 0 : i32
    %c0_i32_0 = arith.constant 0 : i32
    %c0_i32_1 = arith.constant 0 : i32
    return %c0_i32, %c0_i32_0 : i32, i32
  }
  func.func @transform_3(%arg0: i32) -> (i32, i32) {
    %c0_i32 = arith.constant 0 : i32
    %c0_i32_0 = arith.constant 0 : i32
    %c0_i32_1 = arith.constant 0 : i32
    return %c0_i32, %c0_i32_0 : i32, i32
  }
  func.func @transform_4(%arg0: i32) -> (i32, i32) {
    %c0_i32 = arith.constant 0 : i32
    %c0_i32_0 = arith.constant 0 : i32
    return %arg0, %c0_i32 : i32, i32
  }
}

module attributes {stable_mosaic.version = 11 : i64} {
  func.func @_readout_kernel(%arg0: i32, %arg1: memref<128x32xf32, #tpu.memory_space<vmem>>, %arg2: memref<1x32xf32, #tpu.memory_space<vmem>>, %arg3: memref<1x32xf32, #tpu.memory_space<vmem>>, %arg4: memref<32x128xf32, #tpu.memory_space<vmem>>, %arg5: memref<1x128xf32, #tpu.memory_space<vmem>>, %arg6: memref<8x128xf32, #tpu.memory_space<vmem>>, %arg7: memref<8x32xf32, #tpu.memory_space<vmem>>) attributes {dimension_semantics = [#tpu.dimension_semantics<arbitrary>], iteration_bounds = array<i64: 2>, scalar_prefetch = 0 : i64, scratch_operands = 1 : i64, tpu.core_type = #tpu.core_type<tc>, window_params = [{transform_indices = @transform_0, window_bounds = array<i64: 128, 32>}, {pipeline_mode = #tpu.pipeline_mode<synchronous>, transform_indices = @transform_1, window_bounds = array<i64: 1, 32>}, {pipeline_mode = #tpu.pipeline_mode<synchronous>, transform_indices = @transform_2, window_bounds = array<i64: 1, 32>}, {pipeline_mode = #tpu.pipeline_mode<synchronous>, transform_indices = @transform_3, window_bounds = array<i64: 32, 128>}, {pipeline_mode = #tpu.pipeline_mode<synchronous>, transform_indices = @transform_4, window_bounds = array<i64: 1, 128>}, {pipeline_mode = #tpu.pipeline_mode<synchronous>, transform_indices = @transform_5, window_bounds = array<i64: 8, 128>}]} {
    %0 = tpu.iota {dimensions = array<i32: 0>} : vector<128x1xi32>
    %c128_i32 = arith.constant 128 : i32
    %1 = arith.muli %arg0, %c128_i32 : i32
    %2 = vector.broadcast %1 : i32 to vector<128x1xi32>
    %3 = arith.addi %0, %2 : vector<128x1xi32>
    %c0_i32 = arith.constant 0 : i32
    %4 = arith.cmpi eq, %arg0, %c0_i32 : i32
    %5 = arith.extui %4 : i1 to i32
    %c0_i32_0 = arith.constant 0 : i32
    %6 = arith.cmpi ne, %5, %c0_i32_0 : i32
    scf.if %6 {
      %cst_13 = arith.constant 0.000000e+00 : f32
      %31 = vector.broadcast %cst_13 : f32 to vector<8x32xf32>
      %c0_14 = arith.constant 0 : index
      %c0_15 = arith.constant 0 : index
      %32 = vector.load %arg7[%c0_14, %c0_15] : memref<8x32xf32, #tpu.memory_space<vmem>>, vector<8x32xf32>
      tpu.vector_store %arg7[%c0_14, %c0_15], %31 {strides = array<i32>} : memref<8x32xf32, #tpu.memory_space<vmem>>, vector<8x32xf32>,
    } else {
    }
    %c0 = arith.constant 0 : index
    %c0_1 = arith.constant 0 : index
    %7 = vector.load %arg1[%c0, %c0_1] : memref<128x32xf32, #tpu.memory_space<vmem>>, vector<128x32xf32>
    %c0_2 = arith.constant 0 : index
    %c0_3 = arith.constant 0 : index
    %8 = vector.load %arg2[%c0_2, %c0_3] : memref<1x32xf32, #tpu.memory_space<vmem>>, vector<1x32xf32>
    %9 = vector.broadcast %8 : vector<1x32xf32> to vector<128x32xf32>
    %10 = arith.mulf %7, %9 : vector<128x32xf32>
    %c0_4 = arith.constant 0 : index
    %c0_5 = arith.constant 0 : index
    %11 = vector.load %arg3[%c0_4, %c0_5] : memref<1x32xf32, #tpu.memory_space<vmem>>, vector<1x32xf32>
    %12 = vector.broadcast %11 : vector<1x32xf32> to vector<128x32xf32>
    %13 = arith.addf %10, %12 : vector<128x32xf32>
    %cst = arith.constant 0.000000e+00 : f32
    %14 = vector.broadcast %cst : f32 to vector<128x32xf32>
    %15 = arith.maximumf %13, %14 : vector<128x32xf32>
    %c256_i32 = arith.constant 256 : i32
    %16 = vector.broadcast %c256_i32 : i32 to vector<128x1xi32>
    %17 = arith.cmpi slt, %3, %16 : vector<128x1xi32>
    %cst_6 = arith.constant 0.000000e+00 : f32
    %18 = vector.shape_cast %17 : vector<128x1xi1> to vector<128x1xi1>
    %19 = vector.broadcast %18 : vector<128x1xi1> to vector<128x32xi1>
    %20 = vector.broadcast %cst_6 : f32 to vector<128x32xf32>
    %21 = arith.select %19, %15, %20 : vector<128x32xi1>, vector<128x32xf32>
    %c0_7 = arith.constant 0 : index
    %c0_8 = arith.constant 0 : index
    %22 = vector.load %arg7[%c0_7, %c0_8] : memref<8x32xf32, #tpu.memory_space<vmem>>, vector<8x32xf32>
    %cst_9 = arith.constant dense<0.000000e+00> : vector<32xf32>
    %23 = vector.multi_reduction <add>, %21, %cst_9 [0] : vector<128x32xf32> to vector<32xf32>
    %24 = vector.shape_cast %23 : vector<32xf32> to vector<1x32xf32>
    %25 = vector.broadcast %24 : vector<1x32xf32> to vector<8x32xf32>
    %26 = arith.addf %22, %25 : vector<8x32xf32>
    %c0_10 = arith.constant 0 : index
    %c0_11 = arith.constant 0 : index
    %27 = vector.load %arg7[%c0_10, %c0_11] : memref<8x32xf32, #tpu.memory_space<vmem>>, vector<8x32xf32>
    tpu.vector_store %arg7[%c0_10, %c0_11], %26 {strides = array<i32>} : memref<8x32xf32, #tpu.memory_space<vmem>>, vector<8x32xf32>,
    %c1_i32 = arith.constant 1 : i32
    %28 = arith.cmpi eq, %arg0, %c1_i32 : i32
    %29 = arith.extui %28 : i1 to i32
    %c0_i32_12 = arith.constant 0 : i32
    %30 = arith.cmpi ne, %29, %c0_i32_12 : i32
    scf.if %30 {
      %c0_13 = arith.constant 0 : index
      %c0_14 = arith.constant 0 : index
      %31 = vector.load %arg7[%c0_13, %c0_14] : memref<8x32xf32, #tpu.memory_space<vmem>>, vector<8x32xf32>
      %cst_15 = arith.constant 3.906250e-03 : f32
      %32 = vector.broadcast %cst_15 : f32 to vector<8x32xf32>
      %33 = arith.mulf %31, %32 : vector<8x32xf32>
      %c0_16 = arith.constant 0 : index
      %c0_17 = arith.constant 0 : index
      %34 = vector.load %arg4[%c0_16, %c0_17] : memref<32x128xf32, #tpu.memory_space<vmem>>, vector<32x128xf32>
      %cst_18 = arith.constant dense<0.000000e+00> : vector<8x128xf32>
      %35 = tpu.matmul %33, %34, %cst_18 {dimension_numbers = #tpu.dot_dimension_numbers<[1], [0], [0], [1], [0, 0, 1, 1], [], []>} : vector<8x32xf32>, vector<32x128xf32>, vector<8x128xf32> -> vector<8x128xf32>
      %c0_19 = arith.constant 0 : index
      %c0_20 = arith.constant 0 : index
      %36 = vector.load %arg5[%c0_19, %c0_20] : memref<1x128xf32, #tpu.memory_space<vmem>>, vector<1x128xf32>
      %37 = vector.broadcast %36 : vector<1x128xf32> to vector<8x128xf32>
      %38 = arith.addf %35, %37 : vector<8x128xf32>
      %c0_21 = arith.constant 0 : index
      %c0_22 = arith.constant 0 : index
      %39 = vector.load %arg6[%c0_21, %c0_22] : memref<8x128xf32, #tpu.memory_space<vmem>>, vector<8x128xf32>
      tpu.vector_store %arg6[%c0_21, %c0_22], %38 {strides = array<i32>} : memref<8x128xf32, #tpu.memory_space<vmem>>, vector<8x128xf32>,
    } else {
    }
    return
  }
  func.func @transform_0(%arg0: i32) -> (i32, i32) {
    %c0_i32 = arith.constant 0 : i32
    %c0_i32_0 = arith.constant 0 : i32
    return %arg0, %c0_i32 : i32, i32
  }
  func.func @transform_1(%arg0: i32) -> (i32, i32) {
    %c0_i32 = arith.constant 0 : i32
    %c0_i32_0 = arith.constant 0 : i32
    %c0_i32_1 = arith.constant 0 : i32
    return %c0_i32, %c0_i32_0 : i32, i32
  }
  func.func @transform_2(%arg0: i32) -> (i32, i32) {
    %c0_i32 = arith.constant 0 : i32
    %c0_i32_0 = arith.constant 0 : i32
    %c0_i32_1 = arith.constant 0 : i32
    return %c0_i32, %c0_i32_0 : i32, i32
  }
  func.func @transform_3(%arg0: i32) -> (i32, i32) {
    %c0_i32 = arith.constant 0 : i32
    %c0_i32_0 = arith.constant 0 : i32
    %c0_i32_1 = arith.constant 0 : i32
    return %c0_i32, %c0_i32_0 : i32, i32
  }
  func.func @transform_4(%arg0: i32) -> (i32, i32) {
    %c0_i32 = arith.constant 0 : i32
    %c0_i32_0 = arith.constant 0 : i32
    %c0_i32_1 = arith.constant 0 : i32
    return %c0_i32, %c0_i32_0 : i32, i32
  }
  func.func @transform_5(%arg0: i32) -> (i32, i32) {
    %c0_i32 = arith.constant 0 : i32
    %c0_i32_0 = arith.constant 0 : i32
    %c0_i32_1 = arith.constant 0 : i32
    return %c0_i32, %c0_i32_0 : i32, i32
  }
}

</mosaic_0001>

<llo_original>
// kernel: gnn_forward.5
$region0: #{gnn_forward.5}
  #allocation0 [shape = 'u32[]', space=smem, size = 0x4, offset = 0x4, fixed_abs, tag = 'smem constant byte address 0x4 - core index']
  #allocation1 [shape = 'u32[72,128]{1,0:T(1,128)}', space=vmem, size = 0x9000, scoped, tag = 'internal scratch']
  %s0 = inlined_call_operand.vmem [shape: f32[256,16], index: 0, kind: input, shape index: {}]
  %s1 = inlined_call_operand.vmem [shape: bf16[16,32], index: 1, kind: input, shape index: {}]
  %s2 = inlined_call_operand.vmem [shape: bf16[256,32], index: 2, kind: output, shape index: {}]
  %s3 = sld [smem:[#allocation0]]
  $region41: #{gnn_forward.5} parent=0
    _
  %s5 = ssub.s32 1, %s3
  %s6 = scalar_select 0, %s5, %s3
  loop: start=0, step=1, limit=4
  $region2: #{gnn_forward.5} parent=0 // loop_pre_header
    _
  $region3: #{gnn_forward.5} parent=0 // loop_header
    %s8 = sphi 0, %s12
    %p9 = scmp.ge.s32.totalorder %s8, 4
    %s18 = sphi 0, %s20
    %s21 = sphi 0, %s18
    %s22 = sphi 0, %s21
    %s38 = sphi 0, %s22
    %s42 = sphi 0, %s42
    %s44 = sphi 0, %s42
    %s45 = sphi 0, %s44
    %s59 = sphi 0, %s45
    %s65 = sphi 0, %s67
    %s68 = sphi 0, %s65
    %s69 = sphi 0, %s68
    %s85 = sphi 0, %s69
  $region4: #{gnn_forward.5} parent=0 // loop_header_branch
    %11 = sbr.rel (%p9) target = $region8
  $region5: #{gnn_forward.5} parent=0 // loop_body
    %s13 = ssub.s32 %s8, 1
    %s14 = ssub.s32 %s8, 2
    %s15 = sadd.s32 %s8, 1
    %s16 = ssub.s32 %s8, %s15
    %p17 = scmp.eq.s32.totalorder %s16, 0
    %s19 = sadd.s32 %s18, 1
    %s20 = scalar_select %p17, %s18, %s19
    %p23 = pneg %p17
    %p24 = scmp.eq.s32.totalorder %s8, 1
    %p25 = por %p23, %p24
    %p26 = scmp.ne.s32.totalorder %s18, %s21
    %p27 = scmp.eq.s32.totalorder %s8, 0
    %p28 = por %p26, %p27
    %p29 = scmp.ne.s32.totalorder %s18, %s21
    %p30 = scmp.eq.s32.totalorder %s13, 1
    %p31 = por %p29, %p30
    %p32 = scmp.ne.s32.totalorder %s21, %s22
    %p33 = scmp.eq.s32.totalorder %s13, 0
    %p34 = por %p32, %p33
    %p35 = scmp.ne.s32.totalorder %s21, %s22
    %p36 = scmp.eq.s32.totalorder %s14, 1
    %p37 = por %p35, %p36
    %p39 = scmp.ne.s32.totalorder %s22, %s38
    %p40 = scmp.eq.s32.totalorder %s14, 0
    %p41 = por %p39, %p40
    %s43 = sadd.s32 %s42, 1
    %p46 = scmp.eq.s32.totalorder %s8, 1
    %p47 = scmp.ne.s32.totalorder %s42, %s44
    %p48 = scmp.eq.s32.totalorder %s8, 0
    %p49 = por %p47, %p48
    %p50 = scmp.ne.s32.totalorder %s42, %s44
    %p51 = scmp.eq.s32.totalorder %s13, 1
    %p52 = por %p50, %p51
    %p53 = scmp.ne.s32.totalorder %s44, %s45
    %p54 = scmp.eq.s32.totalorder %s13, 0
    %p55 = por %p53, %p54
    %p56 = scmp.ne.s32.totalorder %s44, %s45
    %p57 = scmp.eq.s32.totalorder %s14, 1
    %p58 = por %p56, %p57
    %p60 = scmp.ne.s32.totalorder %s45, %s59
    %p61 = scmp.eq.s32.totalorder %s14, 0
    %p62 = por %p60, %p61
    %s63 = ssub.s32 %s8, %s15
    %p64 = scmp.eq.s32.totalorder %s63, 0
    %s66 = sadd.s32 %s65, 1
    %s67 = scalar_select %p64, %s65, %s66
    %p70 = pneg %p64
    %p71 = scmp.eq.s32.totalorder %s8, 1
    %p72 = por %p70, %p71
    %p73 = scmp.ne.s32.totalorder %s65, %s68
    %p74 = scmp.eq.s32.totalorder %s8, 0
    %p75 = por %p73, %p74
    %p76 = scmp.ne.s32.totalorder %s65, %s68
    %p77 = scmp.eq.s32.totalorder %s13, 1
    %p78 = por %p76, %p77
    %p79 = scmp.ne.s32.totalorder %s68, %s69
    %p80 = scmp.eq.s32.totalorder %s13, 0
    %p81 = por %p79, %p80
    %p82 = scmp.ne.s32.totalorder %s68, %s69
    %p83 = scmp.eq.s32.totalorder %s14, 1
    %p84 = por %p82, %p83
    %p86 = scmp.ne.s32.totalorder %s69, %s85
    %p87 = scmp.eq.s32.totalorder %s14, 0
    %p88 = por %p86, %p87
    %p89 = scmp.le.s32.totalorder 1, %s8
    %p90 = scmp.lt.s32.totalorder %s8, 3
    %p91 = pnand %p89, %p90
    %p92 = pneg %p91
    // Predicated region
    $region9: #{gnn_forward.5} parent=5 // pred_check
      _
    $region10: #{gnn_forward.5} parent=5 // pred_check_branch
      %94 = sbr.rel (%p91) target = $region12
    $region11: #{gnn_forward.5} parent=5 // pred_region
      %s95 = ssub.s32 %s8, 1
      // Predicated region
      $region13: #{gnn_forward.5} parent=11 // pred_check
        %p96 = pneg %p55
      $region14: #{gnn_forward.5} parent=11 // pred_check_branch
        %98 = sbr.rel (%p96) target = $region16
      $region15: #{gnn_forward.5} parent=11 // pred_region
        _
      $region16: #{gnn_forward.5} parent=11 // pred_fallthru
        _
    $region12: #{gnn_forward.5} parent=5 // pred_fallthru
      _
    %p99 = scmp.lt.s32.totalorder %s8, 2
    // Predicated region
    $region17: #{gnn_forward.5} parent=5 // pred_check
      %p100 = pneg %p99
    $region18: #{gnn_forward.5} parent=5 // pred_check_branch
      %102 = sbr.rel (%p100) target = $region20
    $region19: #{gnn_forward.5} parent=5 // pred_region
      // Predicated region
      $region21: #{gnn_forward.5} parent=19 // pred_check
        %p103 = pneg %p28
      $region22: #{gnn_forward.5} parent=19 // pred_check_branch
        %105 = sbr.rel (%p103) target = $region24
      $region23: #{gnn_forward.5} parent=19 // pred_region
        %s106 = smul.u32 16, %s8
        %p107 = scmp.lt.s32.totalorder %s106, 31
        %s108 = scalar_select %p107, %s106, 31
        %s109 = smul.addr %s108, 8
        %s110 = scalar_lea.vmem %s0, %s109
        %s111 = smul.u32 16, %s8
      $region24: #{gnn_forward.5} parent=19 // pred_fallthru
        _
    $region20: #{gnn_forward.5} parent=5 // pred_fallthru
      _
    %p112 = scmp.le.s32.totalorder 1, %s8
    %p113 = scmp.lt.s32.totalorder %s8, 3
    %p114 = pnand %p112, %p113
    %p115 = pneg %p114
    // Predicated region
    $region25: #{gnn_forward.5} parent=5 // pred_check
      _
    $region26: #{gnn_forward.5} parent=5 // pred_check_branch
      %117 = sbr.rel (%p114) target = $region28
    $region27: #{gnn_forward.5} parent=5 // pred_region
      %s118 = ssub.s32 %s8, 1
      %s119 = smul.u32 16, %s13
      %p120 = scmp.lt.s32.totalorder %s119, 31
      %s121 = scalar_select %p120, %s119, 31
      %s122 = smul.addr %s121, 8
      %s123 = scalar_lea.vmem %s0, %s122
      %p124 = pneg %p34
      %p125 = pneg %p31
      %p126 = pneg %p55
      %p127 = pneg %p52
      %p128 = pneg %p81
      %p129 = pneg %p78
      %s130 = smul.u32 16, %s13
      %p131 = scmp.lt.s32.totalorder %s130, 31
      %s132 = scalar_select %p131, %s130, 31
      %s133 = smul.addr %s132, 4
      %s134 = scalar_lea.vmem %s2, %s133
      %s135 = smul.u32 16, %s13
      %p136 = scmp.lt.s32.totalorder %s135, 31
      %s137 = scalar_select %p136, %s135, 31
      %s138 = smul.addr %s137, 8
      %s139 = scalar_lea.vmem %s0, %s138
      %s140 = smul.u32 16, %s13
      %s141 = smul.u32 16, %s13
      %p142 = scmp.lt.s32.totalorder %s141, 31
      %s143 = scalar_select %p142, %s141, 31
      %s144 = smul.addr %s143, 4
      %s145 = scalar_lea.vmem %s2, %s144
      %s146 = smul.u32 16, %s13
      %v148 = vld [vmem:[%s139] sm:$0xff]
      %v149 = vld [vmem:[%s139 + $0x8] sm:$0xff]
      %v150 = vld [vmem:[%s139 + $0x10] sm:$0xff]
      %v151 = vld [vmem:[%s139 + $0x18] sm:$0xff]
      %v152 = vld [vmem:[%s139 + $0x20] sm:$0xff]
      %v153 = vld [vmem:[%s139 + $0x28] sm:$0xff]
      %v154 = vld [vmem:[%s139 + $0x30] sm:$0xff]
      %v155 = vld [vmem:[%s139 + $0x38] sm:$0xff]
      %v156 = vld [vmem:[%s139 + $0x40] sm:$0xff]
      %v157 = vld [vmem:[%s139 + $0x48] sm:$0xff]
      %v158 = vld [vmem:[%s139 + $0x50] sm:$0xff]
      %v159 = vld [vmem:[%s139 + $0x58] sm:$0xff]
      %v160 = vld [vmem:[%s139 + $0x60] sm:$0xff]
      %v161 = vld [vmem:[%s139 + $0x68] sm:$0xff]
      %v162 = vld [vmem:[%s139 + $0x70] sm:$0xff]
      %v163 = vld [vmem:[%s139 + $0x78] sm:$0xff]
      %v164 = vpack.c.bf16 %v149, %v148
      %v165 = vpack.c.bf16 %v151, %v150
      %v166 = vpack.c.bf16 %v153, %v152
      %v167 = vpack.c.bf16 %v155, %v154
      %v168 = vpack.c.bf16 %v157, %v156
      %v169 = vpack.c.bf16 %v159, %v158
      %v170 = vpack.c.bf16 %v161, %v160
      %v171 = vpack.c.bf16 %v163, %v162
      %v172 = vld [vmem:[%s1] sm:$0xf]
      %v173 = vld [vmem:[%s1 + $0x4] sm:$0xf]
      %v176 = vunpack.c.l.b16 %v172
      %v177 = vunpack.c.l.b16 %v173
      %v178 = vpack.c.b16 %v177, %v176
      %vm180 = vcmask 130048
      %v182 = vsel %vm180, %v164, 0
      %v185 = vsel %vm180, %v165, 0
      %v188 = vsel %vm180, %v166, 0
      %v191 = vsel %vm180, %v167, 0
      %v194 = vsel %vm180, %v168, 0
      %v197 = vsel %vm180, %v169, 0
      %v200 = vsel %vm180, %v170, 0
      %v203 = vsel %vm180, %v171, 0
      %205 = vmatpush.bf16.msra.mxu0 0
      %206 = vmatpush.bf16.msra.mxu0 0
      %207 = vmatpush.bf16.msra.mxu0 0
      %208 = vmatpush.bf16.msra.mxu0 0
      %209 = vmatpush.bf16.msra.mxu0 0
      %210 = vmatpush.bf16.msra.mxu0 0
      %211 = vmatpush.bf16.msra.mxu0 0
      %212 = vmatpush.bf16.msra.mxu0 %v178
      %213 = vmatmul.bf16.gmra.mxu0 %v182
      %v214 = vpop.f32.mrf.mxu0
      %v215 = vadd.f32 0.0, %v214
      %v216 = vpop.f32.mrf.mxu0
      %v217 = vadd.f32 0.0, %v216
      %218 = vmatmul.bf16.gmra.mxu0 %v185
      %v219 = vpop.f32.mrf.mxu0
      %v220 = vadd.f32 0.0, %v219
      %v221 = vpop.f32.mrf.mxu0
      %v222 = vadd.f32 0.0, %v221
      %223 = vmatmul.bf16.gmra.mxu0 %v188
      %v224 = vpop.f32.mrf.mxu0
      %v225 = vadd.f32 0.0, %v224
      %v226 = vpop.f32.mrf.mxu0
      %v227 = vadd.f32 0.0, %v226
      %228 = vmatmul.bf16.gmra.mxu0 %v191
      %v229 = vpop.f32.mrf.mxu0
      %v230 = vadd.f32 0.0, %v229
      %v231 = vpop.f32.mrf.mxu0
      %v232 = vadd.f32 0.0, %v231
      %233 = vmatmul.bf16.gmra.mxu0 %v194
      %v234 = vpop.f32.mrf.mxu0
      %v235 = vadd.f32 0.0, %v234
      %v236 = vpop.f32.mrf.mxu0
      %v237 = vadd.f32 0.0, %v236
      %238 = vmatmul.bf16.gmra.mxu0 %v197
      %v239 = vpop.f32.mrf.mxu0
      %v240 = vadd.f32 0.0, %v239
      %v241 = vpop.f32.mrf.mxu0
      %v242 = vadd.f32 0.0, %v241
      %243 = vmatmul.bf16.gmra.mxu0 %v200
      %v244 = vpop.f32.mrf.mxu0
      %v245 = vadd.f32 0.0, %v244
      %v246 = vpop.f32.mrf.mxu0
      %v247 = vadd.f32 0.0, %v246
      %248 = vmatmul.bf16.gmra.mxu0 %v203
      %v249 = vpop.f32.mrf.mxu0
      %v250 = vadd.f32 0.0, %v249
      %v251 = vpop.f32.mrf.mxu0
      %v252 = vadd.f32 0.0, %v251
      %253 = vdwg.mxu0
      %v254 = vpack.c.bf16 %v215, %v215
      %v255 = vpack.c.bf16 %v217, %v217
      %v256 = vpack.c.bf16 %v220, %v220
      %v257 = vpack.c.bf16 %v222, %v222
      %v258 = vpack.c.bf16 %v225, %v225
      %v259 = vpack.c.bf16 %v227, %v227
      %v260 = vpack.c.bf16 %v230, %v230
      %v261 = vpack.c.bf16 %v232, %v232
      %v262 = vpack.c.bf16 %v235, %v235
      %v263 = vpack.c.bf16 %v237, %v237
      %v264 = vpack.c.bf16 %v240, %v240
      %v265 = vpack.c.bf16 %v242, %v242
      %v266 = vpack.c.bf16 %v245, %v245
      %v267 = vpack.c.bf16 %v247, %v247
      %v268 = vpack.c.bf16 %v250, %v250
      %v269 = vpack.c.bf16 %v252, %v252
      %vm270 = vcmask 257024
      %271 = vst.msk [vmem:[%s145] sm:$0xf] %vm270, %v254
      %272 = vst.msk [vmem:[%s145 + $0x4] sm:$0xf] %vm270, %v255
      %273 = vst.msk [vmem:[%s145 + $0x8] sm:$0xf] %vm270, %v256
      %274 = vst.msk [vmem:[%s145 + $0xc] sm:$0xf] %vm270, %v257
      %275 = vst.msk [vmem:[%s145 + $0x10] sm:$0xf] %vm270, %v258
      %276 = vst.msk [vmem:[%s145 + $0x14] sm:$0xf] %vm270, %v259
      %277 = vst.msk [vmem:[%s145 + $0x18] sm:$0xf] %vm270, %v260
      %278 = vst.msk [vmem:[%s145 + $0x1c] sm:$0xf] %vm270, %v261
      %279 = vst.msk [vmem:[%s145 + $0x20] sm:$0xf] %vm270, %v262
      %280 = vst.msk [vmem:[%s145 + $0x24] sm:$0xf] %vm270, %v263
      %281 = vst.msk [vmem:[%s145 + $0x28] sm:$0xf] %vm270, %v264
      %282 = vst.msk [vmem:[%s145 + $0x2c] sm:$0xf] %vm270, %v265
      %283 = vst.msk [vmem:[%s145 + $0x30] sm:$0xf] %vm270, %v266
      %284 = vst.msk [vmem:[%s145 + $0x34] sm:$0xf] %vm270, %v267
      %285 = vst.msk [vmem:[%s145 + $0x38] sm:$0xf] %vm270, %v268
      %286 = vst.msk [vmem:[%s145 + $0x3c] sm:$0xf] %vm270, %v269
      %s287 = smul.u32 16, %s13
      %p288 = scmp.lt.s32.totalorder %s287, 31
      %s289 = scalar_select %p288, %s287, 31
      %s290 = smul.addr %s289, 4
      %s291 = scalar_lea.vmem %s2, %s290
      // Predicated region
      $region29: #{gnn_forward.5} parent=27 // pred_check
        %p292 = pneg %p78
      $region30: #{gnn_forward.5} parent=27 // pred_check_branch
        %294 = sbr.rel (%p292) target = $region32
      $region31: #{gnn_forward.5} parent=27 // pred_region
        %s295 = smul.u32 16, %s13
      $region32: #{gnn_forward.5} parent=27 // pred_fallthru
        _
    $region28: #{gnn_forward.5} parent=5 // pred_fallthru
      _
    %p296 = scmp.le.s32.totalorder 2, %s8
    // Predicated region
    $region33: #{gnn_forward.5} parent=5 // pred_check
      %p297 = pneg %p296
    $region34: #{gnn_forward.5} parent=5 // pred_check_branch
      %299 = sbr.rel (%p297) target = $region36
    $region35: #{gnn_forward.5} parent=5 // pred_region
      %s300 = ssub.s32 %s8, 2
      // Predicated region
      $region37: #{gnn_forward.5} parent=35 // pred_check
        %p301 = pneg %p84
      $region38: #{gnn_forward.5} parent=35 // pred_check_branch
        %303 = sbr.rel (%p301) target = $region40
      $region39: #{gnn_forward.5} parent=35 // pred_region
        %s304 = smul.u32 16, %s14
        %p305 = scmp.lt.s32.totalorder %s304, 31
        %s306 = scalar_select %p305, %s304, 31
        %s307 = smul.addr %s306, 4
        %s308 = scalar_lea.vmem %s2, %s307
      $region40: #{gnn_forward.5} parent=35 // pred_fallthru
        _
    $region36: #{gnn_forward.5} parent=5 // pred_fallthru
      _
  $region6: #{gnn_forward.5} parent=0 // loop_footer
    %s12 = sadd.s32 1, %s8
  $region7: #{gnn_forward.5} parent=0 // loop_footer_branch
    %7 = sbr.rel target = $region3
  $region8: #{gnn_forward.5} parent=0 // loop_exit
    _

// kernel: gnn_forward.7
$region0: #{gnn_forward.7}
  #allocation0 [shape = 'u32[]', space=smem, size = 0x4, offset = 0x4, fixed_abs, tag = 'smem constant byte address 0x4 - core index']
  #allocation1 [shape = 'u32[72,128]{1,0:T(1,128)}', space=vmem, size = 0x9000, scoped, tag = 'internal scratch']
  %s0 = inlined_call_operand.vmem [shape: f32[256,32], index: 0, kind: input, shape index: {}]
  %s1 = inlined_call_operand.vmem [shape: f32[1,32], index: 1, kind: input, shape index: {}]
  %s2 = inlined_call_operand.vmem [shape: f32[1,32], index: 2, kind: input, shape index: {}]
  %s3 = inlined_call_operand.vmem [shape: bf16[32,32], index: 3, kind: input, shape index: {}]
  %s4 = inlined_call_operand.vmem [shape: bf16[256,32], index: 4, kind: output, shape index: {}]
  %s5 = sld [smem:[#allocation0]]
  $region49: #{gnn_forward.7} parent=0
    _
  %s7 = ssub.s32 1, %s5
  %s8 = scalar_select 0, %s7, %s5
  loop: start=0, step=1, limit=4
  $region2: #{gnn_forward.7} parent=0 // loop_pre_header
    _
  $region3: #{gnn_forward.7} parent=0 // loop_header
    %s10 = sphi 0, %s14
    %p11 = scmp.ge.s32.totalorder %s10, 4
    %s20 = sphi 0, %s22
    %s23 = sphi 0, %s20
    %s24 = sphi 0, %s23
    %s40 = sphi 0, %s24
    %s44 = sphi 0, %s44
    %s46 = sphi 0, %s44
    %s47 = sphi 0, %s46
    %s61 = sphi 0, %s47
    %s65 = sphi 0, %s65
    %s67 = sphi 0, %s65
    %s68 = sphi 0, %s67
    %s82 = sphi 0, %s68
    %s86 = sphi 0, %s86
    %s88 = sphi 0, %s86
    %s89 = sphi 0, %s88
    %s103 = sphi 0, %s89
    %s109 = sphi 0, %s111
    %s112 = sphi 0, %s109
    %s113 = sphi 0, %s112
    %s129 = sphi 0, %s113
  $region4: #{gnn_forward.7} parent=0 // loop_header_branch
    %13 = sbr.rel (%p11) target = $region8
  $region5: #{gnn_forward.7} parent=0 // loop_body
    %s15 = ssub.s32 %s10, 1
    %s16 = ssub.s32 %s10, 2
    %s17 = sadd.s32 %s10, 1
    %s18 = ssub.s32 %s10, %s17
    %p19 = scmp.eq.s32.totalorder %s18, 0
    %s21 = sadd.s32 %s20, 1
    %s22 = scalar_select %p19, %s20, %s21
    %p25 = pneg %p19
    %p26 = scmp.eq.s32.totalorder %s10, 1
    %p27 = por %p25, %p26
    %p28 = scmp.ne.s32.totalorder %s20, %s23
    %p29 = scmp.eq.s32.totalorder %s10, 0
    %p30 = por %p28, %p29
    %p31 = scmp.ne.s32.totalorder %s20, %s23
    %p32 = scmp.eq.s32.totalorder %s15, 1
    %p33 = por %p31, %p32
    %p34 = scmp.ne.s32.totalorder %s23, %s24
    %p35 = scmp.eq.s32.totalorder %s15, 0
    %p36 = por %p34, %p35
    %p37 = scmp.ne.s32.totalorder %s23, %s24
    %p38 = scmp.eq.s32.totalorder %s16, 1
    %p39 = por %p37, %p38
    %p41 = scmp.ne.s32.totalorder %s24, %s40
    %p42 = scmp.eq.s32.totalorder %s16, 0
    %p43 = por %p41, %p42
    %s45 = sadd.s32 %s44, 1
    %p48 = scmp.eq.s32.totalorder %s10, 1
    %p49 = scmp.ne.s32.totalorder %s44, %s46
    %p50 = scmp.eq.s32.totalorder %s10, 0
    %p51 = por %p49, %p50
    %p52 = scmp.ne.s32.totalorder %s44, %s46
    %p53 = scmp.eq.s32.totalorder %s15, 1
    %p54 = por %p52, %p53
    %p55 = scmp.ne.s32.totalorder %s46, %s47
    %p56 = scmp.eq.s32.totalorder %s15, 0
    %p57 = por %p55, %p56
    %p58 = scmp.ne.s32.totalorder %s46, %s47
    %p59 = scmp.eq.s32.totalorder %s16, 1
    %p60 = por %p58, %p59
    %p62 = scmp.ne.s32.totalorder %s47, %s61
    %p63 = scmp.eq.s32.totalorder %s16, 0
    %p64 = por %p62, %p63
    %s66 = sadd.s32 %s65, 1
    %p69 = scmp.eq.s32.totalorder %s10, 1
    %p70 = scmp.ne.s32.totalorder %s65, %s67
    %p71 = scmp.eq.s32.totalorder %s10, 0
    %p72 = por %p70, %p71
    %p73 = scmp.ne.s32.totalorder %s65, %s67
    %p74 = scmp.eq.s32.totalorder %s15, 1
    %p75 = por %p73, %p74
    %p76 = scmp.ne.s32.totalorder %s67, %s68
    %p77 = scmp.eq.s32.totalorder %s15, 0
    %p78 = por %p76, %p77
    %p79 = scmp.ne.s32.totalorder %s67, %s68
    %p80 = scmp.eq.s32.totalorder %s16, 1
    %p81 = por %p79, %p80
    %p83 = scmp.ne.s32.totalorder %s68, %s82
    %p84 = scmp.eq.s32.totalorder %s16, 0
    %p85 = por %p83, %p84
    %s87 = sadd.s32 %s86, 1
    %p90 = scmp.eq.s32.totalorder %s10, 1
    %p91 = scmp.ne.s32.totalorder %s86, %s88
    %p92 = scmp.eq.s32.totalorder %s10, 0
    %p93 = por %p91, %p92
    %p94 = scmp.ne.s32.totalorder %s86, %s88
    %p95 = scmp.eq.s32.totalorder %s15, 1
    %p96 = por %p94, %p95
    %p97 = scmp.ne.s32.totalorder %s88, %s89
    %p98 = scmp.eq.s32.totalorder %s15, 0
    %p99 = por %p97, %p98
    %p100 = scmp.ne.s32.totalorder %s88, %s89
    %p101 = scmp.eq.s32.totalorder %s16, 1
    %p102 = por %p100, %p101
    %p104 = scmp.ne.s32.totalorder %s89, %s103
    %p105 = scmp.eq.s32.totalorder %s16, 0
    %p106 = por %p104, %p105
    %s107 = ssub.s32 %s10, %s17
    %p108 = scmp.eq.s32.totalorder %s107, 0
    %s110 = sadd.s32 %s109, 1
    %s111 = scalar_select %p108, %s109, %s110
    %p114 = pneg %p108
    %p115 = scmp.eq.s32.totalorder %s10, 1
    %p116 = por %p114, %p115
    %p117 = scmp.ne.s32.totalorder %s109, %s112
    %p118 = scmp.eq.s32.totalorder %s10, 0
    %p119 = por %p117, %p118
    %p120 = scmp.ne.s32.totalorder %s109, %s112
    %p121 = scmp.eq.s32.totalorder %s15, 1
    %p122 = por %p120, %p121
    %p123 = scmp.ne.s32.totalorder %s112, %s113
    %p124 = scmp.eq.s32.totalorder %s15, 0
    %p125 = por %p123, %p124
    %p126 = scmp.ne.s32.totalorder %s112, %s113
    %p127 = scmp.eq.s32.totalorder %s16, 1
    %p128 = por %p126, %p127
    %p130 = scmp.ne.s32.totalorder %s113, %s129
    %p131 = scmp.eq.s32.totalorder %s16, 0
    %p132 = por %p130, %p131
    %p133 = scmp.le.s32.totalorder 1, %s10
    %p134 = scmp.lt.s32.totalorder %s10, 3
    %p135 = pnand %p133, %p134
    %p136 = pneg %p135
    // Predicated region
    $region9: #{gnn_forward.7} parent=5 // pred_check
      _
    $region10: #{gnn_forward.7} parent=5 // pred_check_branch
      %138 = sbr.rel (%p135) target = $region12
    $region11: #{gnn_forward.7} parent=5 // pred_region
      %s139 = ssub.s32 %s10, 1
      // Predicated region
      $region13: #{gnn_forward.7} parent=11 // pred_check
        %p140 = pneg %p57
      $region14: #{gnn_forward.7} parent=11 // pred_check_branch
        %142 = sbr.rel (%p140) target = $region16
      $region15: #{gnn_forward.7} parent=11 // pred_region
        _
      $region16: #{gnn_forward.7} parent=11 // pred_fallthru
        _
      // Predicated region
      $region17: #{gnn_forward.7} parent=11 // pred_check
        %p143 = pneg %p78
      $region18: #{gnn_forward.7} parent=11 // pred_check_branch
        %145 = sbr.rel (%p143) target = $region20
      $region19: #{gnn_forward.7} parent=11 // pred_region
        _
      $region20: #{gnn_forward.7} parent=11 // pred_fallthru
        _
      // Predicated region
      $region21: #{gnn_forward.7} parent=11 // pred_check
        %p146 = pneg %p99
      $region22: #{gnn_forward.7} parent=11 // pred_check_branch
        %148 = sbr.rel (%p146) target = $region24
      $region23: #{gnn_forward.7} parent=11 // pred_region
        _
      $region24: #{gnn_forward.7} parent=11 // pred_fallthru
        _
    $region12: #{gnn_forward.7} parent=5 // pred_fallthru
      _
    %p149 = scmp.lt.s32.totalorder %s10, 2
    // Predicated region
    $region25: #{gnn_forward.7} parent=5 // pred_check
      %p150 = pneg %p149
    $region26: #{gnn_forward.7} parent=5 // pred_check_branch
      %152 = sbr.rel (%p150) target = $region28
    $region27: #{gnn_forward.7} parent=5 // pred_region
      // Predicated region
      $region29: #{gnn_forward.7} parent=27 // pred_check
        %p153 = pneg %p30
      $region30: #{gnn_forward.7} parent=27 // pred_check_branch
        %155 = sbr.rel (%p153) target = $region32
      $region31: #{gnn_forward.7} parent=27 // pred_region
        %s156 = smul.u32 16, %s10
        %p157 = scmp.lt.s32.totalorder %s156, 31
        %s158 = scalar_select %p157, %s156, 31
        %s159 = smul.addr %s158, 8
        %s160 = scalar_lea.vmem %s0, %s159
        %s161 = smul.u32 16, %s10
      $region32: #{gnn_forward.7} parent=27 // pred_fallthru
        _
    $region28: #{gnn_forward.7} parent=5 // pred_fallthru
      _
    %p162 = scmp.le.s32.totalorder 1, %s10
    %p163 = scmp.lt.s32.totalorder %s10, 3
    %p164 = pnand %p162, %p163
    %p165 = pneg %p164
    // Predicated region
    $region33: #{gnn_forward.7} parent=5 // pred_check
      _
    $region34: #{gnn_forward.7} parent=5 // pred_check_branch
      %167 = sbr.rel (%p164) target = $region36
    $region35: #{gnn_forward.7} parent=5 // pred_region
      %s168 = ssub.s32 %s10, 1
      %s169 = smul.u32 16, %s15
      %p170 = scmp.lt.s32.totalorder %s169, 31
      %s171 = scalar_select %p170, %s169, 31
      %s172 = smul.addr %s171, 8
      %s173 = scalar_lea.vmem %s0, %s172
      %p174 = pneg %p36
      %p175 = pneg %p33
      %p176 = pneg %p57
      %p177 = pneg %p54
      %p178 = pneg %p78
      %p179 = pneg %p75
      %p180 = pneg %p99
      %p181 = pneg %p96
      %p182 = pneg %p125
      %p183 = pneg %p122
      %s184 = smul.u32 16, %s15
      %p185 = scmp.lt.s32.totalorder %s184, 31
      %s186 = scalar_select %p185, %s184, 31
      %s187 = smul.addr %s186, 4
      %s188 = scalar_lea.vmem %s4, %s187
      %s189 = smul.u32 16, %s15
      %p190 = scmp.lt.s32.totalorder %s189, 31
      %s191 = scalar_select %p190, %s189, 31
      %s192 = smul.addr %s191, 8
      %s193 = scalar_lea.vmem %s0, %s192
      %s194 = smul.u32 16, %s15
      %s195 = smul.u32 16, %s15
      %p196 = scmp.lt.s32.totalorder %s195, 31
      %s197 = scalar_select %p196, %s195, 31
      %s198 = smul.addr %s197, 4
      %s199 = scalar_lea.vmem %s4, %s198
      %s200 = smul.u32 16, %s15
      %v202 = vld [vmem:[%s193] sm:$0xff]
      %v203 = vld [vmem:[%s193 + $0x8] sm:$0xff]
      %v204 = vld [vmem:[%s193 + $0x10] sm:$0xff]
      %v205 = vld [vmem:[%s193 + $0x18] sm:$0xff]
      %v206 = vld [vmem:[%s193 + $0x20] sm:$0xff]
      %v207 = vld [vmem:[%s193 + $0x28] sm:$0xff]
      %v208 = vld [vmem:[%s193 + $0x30] sm:$0xff]
      %v209 = vld [vmem:[%s193 + $0x38] sm:$0xff]
      %v210 = vld [vmem:[%s193 + $0x40] sm:$0xff]
      %v211 = vld [vmem:[%s193 + $0x48] sm:$0xff]
      %v212 = vld [vmem:[%s193 + $0x50] sm:$0xff]
      %v213 = vld [vmem:[%s193 + $0x58] sm:$0xff]
      %v214 = vld [vmem:[%s193 + $0x60] sm:$0xff]
      %v215 = vld [vmem:[%s193 + $0x68] sm:$0xff]
      %v216 = vld [vmem:[%s193 + $0x70] sm:$0xff]
      %v217 = vld [vmem:[%s193 + $0x78] sm:$0xff]
      %v218 = vld [vmem:[%s1] sm:$0x1]
      %v220 = vperm.slane %v218, 0
      %v222 = vmul.f32 %v202, %v220
      %v223 = vmul.f32 %v203, %v220
      %v224 = vmul.f32 %v204, %v220
      %v225 = vmul.f32 %v205, %v220
      %v226 = vmul.f32 %v206, %v220
      %v227 = vmul.f32 %v207, %v220
      %v228 = vmul.f32 %v208, %v220
      %v229 = vmul.f32 %v209, %v220
      %v230 = vmul.f32 %v210, %v220
      %v231 = vmul.f32 %v211, %v220
      %v232 = vmul.f32 %v212, %v220
      %v233 = vmul.f32 %v213, %v220
      %v234 = vmul.f32 %v214, %v220
      %v235 = vmul.f32 %v215, %v220
      %v236 = vmul.f32 %v216, %v220
      %v237 = vmul.f32 %v217, %v220
      %v238 = vld [vmem:[%s2] sm:$0x1]
      %v240 = vperm.slane %v238, 0
      %v242 = vadd.f32 %v222, %v240
      %v243 = vadd.f32 %v223, %v240
      %v244 = vadd.f32 %v224, %v240
      %v245 = vadd.f32 %v225, %v240
      %v246 = vadd.f32 %v226, %v240
      %v247 = vadd.f32 %v227, %v240
      %v248 = vadd.f32 %v228, %v240
      %v249 = vadd.f32 %v229, %v240
      %v250 = vadd.f32 %v230, %v240
      %v251 = vadd.f32 %v231, %v240
      %v252 = vadd.f32 %v232, %v240
      %v253 = vadd.f32 %v233, %v240
      %v254 = vadd.f32 %v234, %v240
      %v255 = vadd.f32 %v235, %v240
      %v256 = vadd.f32 %v236, %v240
      %v257 = vadd.f32 %v237, %v240
      %v258 = vmax.f32 %v242, 0.0
      %v259 = vmax.f32 %v243, 0.0
      %v260 = vmax.f32 %v244, 0.0
      %v261 = vmax.f32 %v245, 0.0
      %v262 = vmax.f32 %v246, 0.0
      %v263 = vmax.f32 %v247, 0.0
      %v264 = vmax.f32 %v248, 0.0
      %v265 = vmax.f32 %v249, 0.0
      %v266 = vmax.f32 %v250, 0.0
      %v267 = vmax.f32 %v251, 0.0
      %v268 = vmax.f32 %v252, 0.0
      %v269 = vmax.f32 %v253, 0.0
      %v270 = vmax.f32 %v254, 0.0
      %v271 = vmax.f32 %v255, 0.0
      %v272 = vmax.f32 %v256, 0.0
      %v273 = vmax.f32 %v257, 0.0
      %v274 = vpack.c.bf16 %v259, %v258
      %v275 = vpack.c.bf16 %v261, %v260
      %v276 = vpack.c.bf16 %v263, %v262
      %v277 = vpack.c.bf16 %v265, %v264
      %v278 = vpack.c.bf16 %v267, %v266
      %v279 = vpack.c.bf16 %v269, %v268
      %v280 = vpack.c.bf16 %v271, %v270
      %v281 = vpack.c.bf16 %v273, %v272
      %v282 = vld [vmem:[%s3] sm:$0xf]
      %v283 = vld [vmem:[%s3 + $0x4] sm:$0xf]
      %v284 = vld [vmem:[%s3 + $0x8] sm:$0xf]
      %v285 = vld [vmem:[%s3 + $0xc] sm:$0xf]
      %v290 = vunpack.c.l.b16 %v282
      %v291 = vunpack.c.l.b16 %v283
      %v292 = vunpack.c.l.b16 %v284
      %v293 = vunpack.c.l.b16 %v285
      %v294 = vpack.c.b16 %v291, %v290
      %v295 = vpack.c.b16 %v293, %v292
      %vm298 = vcmask 261120
      %v300 = vsel %vm298, %v274, 0
      %v303 = vsel %vm298, %v275, 0
      %v306 = vsel %vm298, %v276, 0
      %v309 = vsel %vm298, %v277, 0
      %v312 = vsel %vm298, %v278, 0
      %v315 = vsel %vm298, %v279, 0
      %v318 = vsel %vm298, %v280, 0
      %v321 = vsel %vm298, %v281, 0
      %323 = vmatpush.bf16.msra.mxu0 0
      %324 = vmatpush.bf16.msra.mxu0 0
      %325 = vmatpush.bf16.msra.mxu0 0
      %326 = vmatpush.bf16.msra.mxu0 0
      %327 = vmatpush.bf16.msra.mxu0 0
      %328 = vmatpush.bf16.msra.mxu0 0
      %329 = vmatpush.bf16.msra.mxu0 %v295
      %330 = vmatpush.bf16.msra.mxu0 %v294
      %331 = vmatmul.bf16.gmra.mxu0 %v300
      %v332 = vpop.f32.mrf.mxu0
      %v333 = vadd.f32 0.0, %v332
      %v334 = vpop.f32.mrf.mxu0
      %v335 = vadd.f32 0.0, %v334
      %336 = vmatmul.bf16.gmra.mxu0 %v303
      %v337 = vpop.f32.mrf.mxu0
      %v338 = vadd.f32 0.0, %v337
      %v339 = vpop.f32.mrf.mxu0
      %v340 = vadd.f32 0.0, %v339
      %341 = vmatmul.bf16.gmra.mxu0 %v306
      %v342 = vpop.f32.mrf.mxu0
      %v343 = vadd.f32 0.0, %v342
      %v344 = vpop.f32.mrf.mxu0
      %v345 = vadd.f32 0.0, %v344
      %346 = vmatmul.bf16.gmra.mxu0 %v309
      %v347 = vpop.f32.mrf.mxu0
      %v348 = vadd.f32 0.0, %v347
      %v349 = vpop.f32.mrf.mxu0
      %v350 = vadd.f32 0.0, %v349
      %351 = vmatmul.bf16.gmra.mxu0 %v312
      %v352 = vpop.f32.mrf.mxu0
      %v353 = vadd.f32 0.0, %v352
      %v354 = vpop.f32.mrf.mxu0
      %v355 = vadd.f32 0.0, %v354
      %356 = vmatmul.bf16.gmra.mxu0 %v315
      %v357 = vpop.f32.mrf.mxu0
      %v358 = vadd.f32 0.0, %v357
      %v359 = vpop.f32.mrf.mxu0
      %v360 = vadd.f32 0.0, %v359
      %361 = vmatmul.bf16.gmra.mxu0 %v318
      %v362 = vpop.f32.mrf.mxu0
      %v363 = vadd.f32 0.0, %v362
      %v364 = vpop.f32.mrf.mxu0
      %v365 = vadd.f32 0.0, %v364
      %366 = vmatmul.bf16.gmra.mxu0 %v321
      %v367 = vpop.f32.mrf.mxu0
      %v368 = vadd.f32 0.0, %v367
      %v369 = vpop.f32.mrf.mxu0
      %v370 = vadd.f32 0.0, %v369
      %371 = vdwg.mxu0
      %v372 = vpack.c.bf16 %v333, %v333
      %v373 = vpack.c.bf16 %v335, %v335
      %v374 = vpack.c.bf16 %v338, %v338
      %v375 = vpack.c.bf16 %v340, %v340
      %v376 = vpack.c.bf16 %v343, %v343
      %v377 = vpack.c.bf16 %v345, %v345
      %v378 = vpack.c.bf16 %v348, %v348
      %v379 = vpack.c.bf16 %v350, %v350
      %v380 = vpack.c.bf16 %v353, %v353
      %v381 = vpack.c.bf16 %v355, %v355
      %v382 = vpack.c.bf16 %v358, %v358
      %v383 = vpack.c.bf16 %v360, %v360
      %v384 = vpack.c.bf16 %v363, %v363
      %v385 = vpack.c.bf16 %v365, %v365
      %v386 = vpack.c.bf16 %v368, %v368
      %v387 = vpack.c.bf16 %v370, %v370
      %vm388 = vcmask 257024
      %389 = vst.msk [vmem:[%s199] sm:$0xf] %vm388, %v372
      %390 = vst.msk [vmem:[%s199 + $0x4] sm:$0xf] %vm388, %v373
      %391 = vst.msk [vmem:[%s199 + $0x8] sm:$0xf] %vm388, %v374
      %392 = vst.msk [vmem:[%s199 + $0xc] sm:$0xf] %vm388, %v375
      %393 = vst.msk [vmem:[%s199 + $0x10] sm:$0xf] %vm388, %v376
      %394 = vst.msk [vmem:[%s199 + $0x14] sm:$0xf] %vm388, %v377
      %395 = vst.msk [vmem:[%s199 + $0x18] sm:$0xf] %vm388, %v378
      %396 = vst.msk [vmem:[%s199 + $0x1c] sm:$0xf] %vm388, %v379
      %397 = vst.msk [vmem:[%s199 + $0x20] sm:$0xf] %vm388, %v380
      %398 = vst.msk [vmem:[%s199 + $0x24] sm:$0xf] %vm388, %v381
      %399 = vst.msk [vmem:[%s199 + $0x28] sm:$0xf] %vm388, %v382
      %400 = vst.msk [vmem:[%s199 + $0x2c] sm:$0xf] %vm388, %v383
      %401 = vst.msk [vmem:[%s199 + $0x30] sm:$0xf] %vm388, %v384
      %402 = vst.msk [vmem:[%s199 + $0x34] sm:$0xf] %vm388, %v385
      %403 = vst.msk [vmem:[%s199 + $0x38] sm:$0xf] %vm388, %v386
      %404 = vst.msk [vmem:[%s199 + $0x3c] sm:$0xf] %vm388, %v387
      %s405 = smul.u32 16, %s15
      %p406 = scmp.lt.s32.totalorder %s405, 31
      %s407 = scalar_select %p406, %s405, 31
      %s408 = smul.addr %s407, 4
      %s409 = scalar_lea.vmem %s4, %s408
      // Predicated region
      $region37: #{gnn_forward.7} parent=35 // pred_check
        %p410 = pneg %p122
      $region38: #{gnn_forward.7} parent=35 // pred_check_branch
        %412 = sbr.rel (%p410) target = $region40
      $region39: #{gnn_forward.7} parent=35 // pred_region
        %s413 = smul.u32 16, %s15
      $region40: #{gnn_forward.7} parent=35 // pred_fallthru
        _
    $region36: #{gnn_forward.7} parent=5 // pred_fallthru
      _
    %p414 = scmp.le.s32.totalorder 2, %s10
    // Predicated region
    $region41: #{gnn_forward.7} parent=5 // pred_check
      %p415 = pneg %p414
    $region42: #{gnn_forward.7} parent=5 // pred_check_branch
      %417 = sbr.rel (%p415) target = $region44
    $region43: #{gnn_forward.7} parent=5 // pred_region
      %s418 = ssub.s32 %s10, 2
      // Predicated region
      $region45: #{gnn_forward.7} parent=43 // pred_check
        %p419 = pneg %p128
      $region46: #{gnn_forward.7} parent=43 // pred_check_branch
        %421 = sbr.rel (%p419) target = $region48
      $region47: #{gnn_forward.7} parent=43 // pred_region
        %s422 = smul.u32 16, %s16
        %p423 = scmp.lt.s32.totalorder %s422, 31
        %s424 = scalar_select %p423, %s422, 31
        %s425 = smul.addr %s424, 4
        %s426 = scalar_lea.vmem %s4, %s425
      $region48: #{gnn_forward.7} parent=43 // pred_fallthru
        _
    $region44: #{gnn_forward.7} parent=5 // pred_fallthru
      _
  $region6: #{gnn_forward.7} parent=0 // loop_footer
    %s14 = sadd.s32 1, %s10
  $region7: #{gnn_forward.7} parent=0 // loop_footer_branch
    %9 = sbr.rel target = $region3
  $region8: #{gnn_forward.7} parent=0 // loop_exit
    _

// kernel: gnn_forward.6
$region0: #{gnn_forward.6}
  #allocation0 [shape = 'u32[]', space=smem, size = 0x4, offset = 0x4, fixed_abs, tag = 'smem constant byte address 0x4 - core index']
  #allocation1 [shape = 'u32[72,128]{1,0:T(1,128)}', space=vmem, size = 0x9000, scoped, tag = 'internal scratch']
  #allocation2 [shape = 'f32[128,32]{1,0:T(8,128)}', space=vmem, size = 0x10000, scoped, tag = 'scratch operand']
  %s0 = inlined_call_operand.vmem [shape: bf16[256,256], index: 0, kind: input, shape index: {}]
  %s1 = inlined_call_operand.vmem [shape: bf16[256,32], index: 1, kind: input, shape index: {}]
  %s2 = inlined_call_operand.vmem [shape: f32[1,32], index: 2, kind: input, shape index: {}]
  %s3 = inlined_call_operand.vmem [shape: f32[256,32], index: 3, kind: output, shape index: {0}]
  %s4 = inlined_call_operand.vmem [shape: f32[2,1,32], index: 4, kind: output, shape index: {1}]
  %s5 = inlined_call_operand.vmem [shape: f32[2,1,32], index: 5, kind: output, shape index: {2}]
  %6 = xla_tuple %s3, %s4, %s5
  %s7 = sld [smem:[#allocation0]]
  $region110: #{gnn_forward.6} parent=0
    _
  %s9 = ssub.s32 1, %s7
  %s10 = scalar_select 0, %s9, %s7
  $region1: #{gnn_forward.6} parent=0
    #allocation3 [shape = 'u8[65536]{0}', space=vmem, size = 0x10000, scoped, tag = 'input window, operand 0']
    loop: start=0, step=1, limit=6
    $region2: #{gnn_forward.6} parent=1 // loop_pre_header
      _
    $region3: #{gnn_forward.6} parent=1 // loop_header
      %s12 = sphi 0, %s16
      %p13 = scmp.ge.s32.totalorder %s12, 6
      %s19 = sphi 0, %s31
      %s20 = sphi 0, %s27
      %s21 = sphi 0, %s19
      %s22 = sphi 0, %s20
      %s23 = sphi 0, %s21
      %s24 = sphi 0, %s22
      %s36 = sphi 0, %s38
      %s39 = sphi 0, %s36
      %s40 = sphi 0, %s39
      %s56 = sphi 0, %s40
      %s62 = sphi 0, %s64
      %s65 = sphi 0, %s62
      %s66 = sphi 0, %s65
      %s82 = sphi 0, %s66
      %s86 = sphi 0, %s86
      %s88 = sphi 0, %s86
      %s89 = sphi 0, %s88
      %s103 = sphi 0, %s89
      %s109 = sphi 0, %s111
      %s112 = sphi 0, %s109
      %s113 = sphi 0, %s112
      %s129 = sphi 0, %s113
      %s135 = sphi 0, %s137
      %s138 = sphi 0, %s135
      %s139 = sphi 0, %s138
      %s155 = sphi 0, %s139
      %s161 = sphi 0, %s163
      %s164 = sphi 0, %s161
      %s165 = sphi 0, %s164
      %s181 = sphi 0, %s165
    $region4: #{gnn_forward.6} parent=1 // loop_header_branch
      %15 = sbr.rel (%p13) target = $region8
    $region5: #{gnn_forward.6} parent=1 // loop_body
      %s17 = ssub.s32 %s12, 1
      %s18 = ssub.s32 %s12, 2
      %s25 = sadd.s32 1, %s20
      %p26 = scmp.ge.s32.totalorder %s25, 2
      %s27 = scalar_select %p26, 0, %s25
      %s28 = sadd.s32 1, %s19
      %s29 = scalar_select %p26, %s28, %s19
      %p30 = scmp.ge.s32.totalorder %s29, 2
      %s31 = scalar_select %p30, 0, %s29
      %s32 = ssub.s32 %s19, %s31
      %s33 = ssub.s32 %s20, %s27
      %s34 = sor.u32 %s32, %s33
      %p35 = scmp.eq.s32.totalorder %s34, 0
      %s37 = sadd.s32 %s36, 1
      %s38 = scalar_select %p35, %s36, %s37
      %p41 = pneg %p35
      %p42 = scmp.eq.s32.totalorder %s12, 3
      %p43 = por %p41, %p42
      %p44 = scmp.ne.s32.totalorder %s36, %s39
      %p45 = scmp.eq.s32.totalorder %s12, 0
      %p46 = por %p44, %p45
      %p47 = scmp.ne.s32.totalorder %s36, %s39
      %p48 = scmp.eq.s32.totalorder %s17, 3
      %p49 = por %p47, %p48
      %p50 = scmp.ne.s32.totalorder %s39, %s40
      %p51 = scmp.eq.s32.totalorder %s17, 0
      %p52 = por %p50, %p51
      %p53 = scmp.ne.s32.totalorder %s39, %s40
      %p54 = scmp.eq.s32.totalorder %s18, 3
      %p55 = por %p53, %p54
      %p57 = scmp.ne.s32.totalorder %s40, %s56
      %p58 = scmp.eq.s32.totalorder %s18, 0
      %p59 = por %p57, %p58
      %s60 = ssub.s32 %s20, %s27
      %p61 = scmp.eq.s32.totalorder %s60, 0
      %s63 = sadd.s32 %s62, 1
      %s64 = scalar_select %p61, %s62, %s63
      %p67 = pneg %p61
      %p68 = scmp.eq.s32.totalorder %s12, 3
      %p69 = por %p67, %p68
      %p70 = scmp.ne.s32.totalorder %s62, %s65
      %p71 = scmp.eq.s32.totalorder %s12, 0
      %p72 = por %p70, %p71
      %p73 = scmp.ne.s32.totalorder %s62, %s65
      %p74 = scmp.eq.s32.totalorder %s17, 3
      %p75 = por %p73, %p74
      %p76 = scmp.ne.s32.totalorder %s65, %s66
      %p77 = scmp.eq.s32.totalorder %s17, 0
      %p78 = por %p76, %p77
      %p79 = scmp.ne.s32.totalorder %s65, %s66
      %p80 = scmp.eq.s32.totalorder %s18, 3
      %p81 = por %p79, %p80
      %p83 = scmp.ne.s32.totalorder %s66, %s82
      %p84 = scmp.eq.s32.totalorder %s18, 0
      %p85 = por %p83, %p84
      %s87 = sadd.s32 %s86, 1
      %p90 = scmp.eq.s32.totalorder %s12, 3
      %p91 = scmp.ne.s32.totalorder %s86, %s88
      %p92 = scmp.eq.s32.totalorder %s12, 0
      %p93 = por %p91, %p92
      %p94 = scmp.ne.s32.totalorder %s86, %s88
      %p95 = scmp.eq.s32.totalorder %s17, 3
      %p96 = por %p94, %p95
      %p97 = scmp.ne.s32.totalorder %s88, %s89
      %p98 = scmp.eq.s32.totalorder %s17, 0
      %p99 = por %p97, %p98
      %p100 = scmp.ne.s32.totalorder %s88, %s89
      %p101 = scmp.eq.s32.totalorder %s18, 3
      %p102 = por %p100, %p101
      %p104 = scmp.ne.s32.totalorder %s89, %s103
      %p105 = scmp.eq.s32.totalorder %s18, 0
      %p106 = por %p104, %p105
      %s107 = ssub.s32 %s19, %s31
      %p108 = scmp.eq.s32.totalorder %s107, 0
      %s110 = sadd.s32 %s109, 1
      %s111 = scalar_select %p108, %s109, %s110
      %p114 = pneg %p108
      %p115 = scmp.eq.s32.totalorder %s12, 3
      %p116 = por %p114, %p115
      %p117 = scmp.ne.s32.totalorder %s109, %s112
      %p118 = scmp.eq.s32.totalorder %s12, 0
      %p119 = por %p117, %p118
      %p120 = scmp.ne.s32.totalorder %s109, %s112
      %p121 = scmp.eq.s32.totalorder %s17, 3
      %p122 = por %p120, %p121
      %p123 = scmp.ne.s32.totalorder %s112, %s113
      %p124 = scmp.eq.s32.totalorder %s17, 0
      %p125 = por %p123, %p124
      %p126 = scmp.ne.s32.totalorder %s112, %s113
      %p127 = scmp.eq.s32.totalorder %s18, 3
      %p128 = por %p126, %p127
      %p130 = scmp.ne.s32.totalorder %s113, %s129
      %p131 = scmp.eq.s32.totalorder %s18, 0
      %p132 = por %p130, %p131
      %s133 = ssub.s32 %s19, %s31
      %p134 = scmp.eq.s32.totalorder %s133, 0
      %s136 = sadd.s32 %s135, 1
      %s137 = scalar_select %p134, %s135, %s136
      %p140 = pneg %p134
      %p141 = scmp.eq.s32.totalorder %s12, 3
      %p142 = por %p140, %p141
      %p143 = scmp.ne.s32.totalorder %s135, %s138
      %p144 = scmp.eq.s32.totalorder %s12, 0
      %p145 = por %p143, %p144
      %p146 = scmp.ne.s32.totalorder %s135, %s138
      %p147 = scmp.eq.s32.totalorder %s17, 3
      %p148 = por %p146, %p147
      %p149 = scmp.ne.s32.totalorder %s138, %s139
      %p150 = scmp.eq.s32.totalorder %s17, 0
      %p151 = por %p149, %p150
      %p152 = scmp.ne.s32.totalorder %s138, %s139
      %p153 = scmp.eq.s32.totalorder %s18, 3
      %p154 = por %p152, %p153
      %p156 = scmp.ne.s32.totalorder %s139, %s155
      %p157 = scmp.eq.s32.totalorder %s18, 0
      %p158 = por %p156, %p157
      %s159 = ssub.s32 %s19, %s31
      %p160 = scmp.eq.s32.totalorder %s159, 0
      %s162 = sadd.s32 %s161, 1
      %s163 = scalar_select %p160, %s161, %s162
      %p166 = pneg %p160
      %p167 = scmp.eq.s32.totalorder %s12, 3
      %p168 = por %p166, %p167
      %p169 = scmp.ne.s32.totalorder %s161, %s164
      %p170 = scmp.eq.s32.totalorder %s12, 0
      %p171 = por %p169, %p170
      %p172 = scmp.ne.s32.totalorder %s161, %s164
      %p173 = scmp.eq.s32.totalorder %s17, 3
      %p174 = por %p172, %p173
      %p175 = scmp.ne.s32.totalorder %s164, %s165
      %p176 = scmp.eq.s32.totalorder %s17, 0
      %p177 = por %p175, %p176
      %p178 = scmp.ne.s32.totalorder %s164, %s165
      %p179 = scmp.eq.s32.totalorder %s18, 3
      %p180 = por %p178, %p179
      %p182 = scmp.ne.s32.totalorder %s165, %s181
      %p183 = scmp.eq.s32.totalorder %s18, 0
      %p184 = por %p182, %p183
      %p185 = scmp.le.s32.totalorder 1, %s12
      %p186 = scmp.lt.s32.totalorder %s12, 5
      %p187 = pnand %p185, %p186
      %p188 = pneg %p187
      // Predicated region
      $region9: #{gnn_forward.6} parent=5 // pred_check
        _
      $region10: #{gnn_forward.6} parent=5 // pred_check_branch
        %190 = sbr.rel (%p187) target = $region12
      $region11: #{gnn_forward.6} parent=5 // pred_region
        %s191 = ssub.s32 %s12, 1
        // Predicated region
        $region13: #{gnn_forward.6} parent=11 // pred_check
          %p192 = pneg %p99
        $region14: #{gnn_forward.6} parent=11 // pred_check_branch
          %194 = sbr.rel (%p192) target = $region16
        $region15: #{gnn_forward.6} parent=11 // pred_region
          _
        $region16: #{gnn_forward.6} parent=11 // pred_fallthru
          _
      $region12: #{gnn_forward.6} parent=5 // pred_fallthru
        _
      %p195 = scmp.lt.s32.totalorder %s12, 4
      // Predicated region
      $region17: #{gnn_forward.6} parent=5 // pred_check
        %p196 = pneg %p195
      $region18: #{gnn_forward.6} parent=5 // pred_check_branch
        %198 = sbr.rel (%p196) target = $region20
      $region19: #{gnn_forward.6} parent=5 // pred_region
        // Predicated region
        $region21: #{gnn_forward.6} parent=19 // pred_check
          %p199 = pneg %p46
        $region22: #{gnn_forward.6} parent=19 // pred_check_branch
          %201 = sbr.rel (%p199) target = $region24
        $region23: #{gnn_forward.6} parent=19 // pred_region
          %s202 = sand.u32 %s36, 1
          %s203 = sand.u32 %s36, 1
          %s204 = smul.addr %s203, 64
          %s205 = scalar_lea.vmem [#allocation3], %s204
          %s206 = smul.u32 16, %s19
          %s207 = smul.addr %s206, 2
          %s208 = sadd.s32 %s20, %s207
          %s209 = smul.addr %s208, 4
          %s210 = scalar_lea.vmem %s0, %s209
          // Predicated region
          $region25: #{gnn_forward.6} parent=23 // pred_check
            _
          $region26: #{gnn_forward.6} parent=23 // pred_check_branch
            %212 = sbr.rel (0) target = $region28
          $region27: #{gnn_forward.6} parent=23 // pred_region
            // Predicated region
            $region29: #{gnn_forward.6} parent=27 // pred_check
              _
            $region30: #{gnn_forward.6} parent=27 // pred_check_branch
              %214 = sbr.rel target = $region32
            $region31: #{gnn_forward.6} parent=27 // pred_region
              // Predicated region
              $region44: #{gnn_forward.6} parent=31 // pred_check
                _
              $region45: #{gnn_forward.6} parent=31 // pred_check_branch
                %260 = sbr.rel (0) target = $region47
              $region46: #{gnn_forward.6} parent=31 // pred_region
                loop: start=0, step=1, limit=1
                $region48: #{gnn_forward.6} parent=46 // loop_pre_header
                  _
                $region49: #{gnn_forward.6} parent=46 // loop_header
                  %s262 = sphi 0, %s266
                  %p263 = scmp.ge.s32.totalorder %s262, 1
                  %s267 = sphi %s210, %s210
                  %s268 = sphi %s205, %s205
                $region50: #{gnn_forward.6} parent=46 // loop_header_branch
                  %265 = sbr.rel (%p263) target = $region54
                $region51: #{gnn_forward.6} parent=46 // loop_body
                  _
                $region52: #{gnn_forward.6} parent=46 // loop_footer
                  %s266 = sadd.s32 1, %s262
                $region53: #{gnn_forward.6} parent=46 // loop_footer_branch
                  %261 = sbr.rel target = $region49
                $region54: #{gnn_forward.6} parent=46 // loop_exit
                  _
                %s270 = ssub.s32 16, 1
                loop: start=0, step=1, limit=1
                $region55: #{gnn_forward.6} parent=46 // loop_pre_header
                  _
                $region56: #{gnn_forward.6} parent=46 // loop_header
                  %s272 = sphi 0, %s276
                  %p273 = scmp.ge.s32.totalorder %s272, 1
                  %s277 = sphi %s210, %s210
                  %s278 = sphi %s205, %s205
                $region57: #{gnn_forward.6} parent=46 // loop_header_branch
                  %275 = sbr.rel (%p273) target = $region61
                $region58: #{gnn_forward.6} parent=46 // loop_body
                  %v279 = vld [vmem:[%s277] sm:%s270]
                  %280 = vst [vmem:[%s278] sm:%s270] %v279
                  %v281 = vld [vmem:[%s277 + $0x8] sm:%s270]
                  %282 = vst [vmem:[%s278 + $0x4] sm:%s270] %v281
                  %v283 = vld [vmem:[%s277 + $0x10] sm:%s270]
                  %284 = vst [vmem:[%s278 + $0x8] sm:%s270] %v283
                  %v285 = vld [vmem:[%s277 + $0x18] sm:%s270]
                  %286 = vst [vmem:[%s278 + $0xc] sm:%s270] %v285
                  %v287 = vld [vmem:[%s277 + $0x20] sm:%s270]
                  %288 = vst [vmem:[%s278 + $0x10] sm:%s270] %v287
                  %v289 = vld [vmem:[%s277 + $0x28] sm:%s270]
                  %290 = vst [vmem:[%s278 + $0x14] sm:%s270] %v289
                  %v291 = vld [vmem:[%s277 + $0x30] sm:%s270]
                  %292 = vst [vmem:[%s278 + $0x18] sm:%s270] %v291
                  %v293 = vld [vmem:[%s277 + $0x38] sm:%s270]
                  %294 = vst [vmem:[%s278 + $0x1c] sm:%s270] %v293
                  %v295 = vld [vmem:[%s277 + $0x40] sm:%s270]
                  %296 = vst [vmem:[%s278 + $0x20] sm:%s270] %v295
                  %v297 = vld [vmem:[%s277 + $0x48] sm:%s270]
                  %298 = vst [vmem:[%s278 + $0x24] sm:%s270] %v297
                  %v299 = vld [vmem:[%s277 + $0x50] sm:%s270]
                  %300 = vst [vmem:[%s278 + $0x28] sm:%s270] %v299
                  %v301 = vld [vmem:[%s277 + $0x58] sm:%s270]
                  %302 = vst [vmem:[%s278 + $0x2c] sm:%s270] %v301
                  %v303 = vld [vmem:[%s277 + $0x60] sm:%s270]
                  %304 = vst [vmem:[%s278 + $0x30] sm:%s270] %v303
                  %v305 = vld [vmem:[%s277 + $0x68] sm:%s270]
                  %306 = vst [vmem:[%s278 + $0x34] sm:%s270] %v305
                  %v307 = vld [vmem:[%s277 + $0x70] sm:%s270]
                  %308 = vst [vmem:[%s278 + $0x38] sm:%s270] %v307
                  %v309 = vld [vmem:[%s277 + $0x78] sm:%s270]
                  %310 = vst [vmem:[%s278 + $0x3c] sm:%s270] %v309
                $region59: #{gnn_forward.6} parent=46 // loop_footer
                  %s276 = sadd.s32 1, %s272
                $region60: #{gnn_forward.6} parent=46 // loop_footer_branch
                  %271 = sbr.rel target = $region56
                $region61: #{gnn_forward.6} parent=46 // loop_exit
                  _
              $region47: #{gnn_forward.6} parent=31 // pred_fallthru
                _
            $region32: #{gnn_forward.6} parent=27 // pred_fallthru
              _
            // Predicated region
            $region33: #{gnn_forward.6} parent=27 // pred_check
              _
            $region34: #{gnn_forward.6} parent=27 // pred_check_branch
              %216 = sbr.rel (0) target = $region36
            $region35: #{gnn_forward.6} parent=27 // pred_region
              %s218 = ssub.s32 16, 1
              loop: start=0, step=1, limit=1
              $region37: #{gnn_forward.6} parent=35 // loop_pre_header
                _
              $region38: #{gnn_forward.6} parent=35 // loop_header
                %s220 = sphi 0, %s224
                %p221 = scmp.ge.s32.totalorder %s220, 1
                %s225 = sphi %s210, %s210
                %s226 = sphi %s205, %s205
              $region39: #{gnn_forward.6} parent=35 // loop_header_branch
                %223 = sbr.rel (%p221) target = $region43
              $region40: #{gnn_forward.6} parent=35 // loop_body
                %v227 = vld [vmem:[%s225] sm:%s218]
                %228 = vst [vmem:[%s226] sm:%s218] %v227
                %v229 = vld [vmem:[%s225 + $0x8] sm:%s218]
                %230 = vst [vmem:[%s226 + $0x4] sm:%s218] %v229
                %v231 = vld [vmem:[%s225 + $0x10] sm:%s218]
                %232 = vst [vmem:[%s226 + $0x8] sm:%s218] %v231
                %v233 = vld [vmem:[%s225 + $0x18] sm:%s218]
                %234 = vst [vmem:[%s226 + $0xc] sm:%s218] %v233
                %v235 = vld [vmem:[%s225 + $0x20] sm:%s218]
                %236 = vst [vmem:[%s226 + $0x10] sm:%s218] %v235
                %v237 = vld [vmem:[%s225 + $0x28] sm:%s218]
                %238 = vst [vmem:[%s226 + $0x14] sm:%s218] %v237
                %v239 = vld [vmem:[%s225 + $0x30] sm:%s218]
                %240 = vst [vmem:[%s226 + $0x18] sm:%s218] %v239
                %v241 = vld [vmem:[%s225 + $0x38] sm:%s218]
                %242 = vst [vmem:[%s226 + $0x1c] sm:%s218] %v241
                %v243 = vld [vmem:[%s225 + $0x40] sm:%s218]
                %244 = vst [vmem:[%s226 + $0x20] sm:%s218] %v243
                %v245 = vld [vmem:[%s225 + $0x48] sm:%s218]
                %246 = vst [vmem:[%s226 + $0x24] sm:%s218] %v245
                %v247 = vld [vmem:[%s225 + $0x50] sm:%s218]
                %248 = vst [vmem:[%s226 + $0x28] sm:%s218] %v247
                %v249 = vld [vmem:[%s225 + $0x58] sm:%s218]
                %250 = vst [vmem:[%s226 + $0x2c] sm:%s218] %v249
                %v251 = vld [vmem:[%s225 + $0x60] sm:%s218]
                %252 = vst [vmem:[%s226 + $0x30] sm:%s218] %v251
                %v253 = vld [vmem:[%s225 + $0x68] sm:%s218]
                %254 = vst [vmem:[%s226 + $0x34] sm:%s218] %v253
                %v255 = vld [vmem:[%s225 + $0x70] sm:%s218]
                %256 = vst [vmem:[%s226 + $0x38] sm:%s218] %v255
                %v257 = vld [vmem:[%s225 + $0x78] sm:%s218]
                %258 = vst [vmem:[%s226 + $0x3c] sm:%s218] %v257
              $region41: #{gnn_forward.6} parent=35 // loop_footer
                %s224 = sadd.s32 1, %s220
              $region42: #{gnn_forward.6} parent=35 // loop_footer_branch
                %219 = sbr.rel target = $region38
              $region43: #{gnn_forward.6} parent=35 // loop_exit
                _
            $region36: #{gnn_forward.6} parent=27 // pred_fallthru
              _
          $region28: #{gnn_forward.6} parent=23 // pred_fallthru
            _
          %311 = vnop
        $region24: #{gnn_forward.6} parent=19 // pred_fallthru
          _
        // Predicated region
        $region62: #{gnn_forward.6} parent=19 // pred_check
          %p312 = pneg %p72
        $region63: #{gnn_forward.6} parent=19 // pred_check_branch
          %314 = sbr.rel (%p312) target = $region65
        $region64: #{gnn_forward.6} parent=19 // pred_region
          %s315 = smul.u32 16, %s20
          %p316 = scmp.lt.s32.totalorder %s315, 31
          %s317 = scalar_select %p316, %s315, 31
          %s318 = smul.addr %s317, 4
          %s319 = scalar_lea.vmem %s1, %s318
          %s320 = smul.u32 16, %s20
        $region65: #{gnn_forward.6} parent=19 // pred_fallthru
          _
      $region20: #{gnn_forward.6} parent=5 // pred_fallthru
        _
      %p321 = scmp.le.s32.totalorder 1, %s12
      %p322 = scmp.lt.s32.totalorder %s12, 5
      %p323 = pnand %p321, %p322
      %p324 = pneg %p323
      // Predicated region
      $region66: #{gnn_forward.6} parent=5 // pred_check
        _
      $region67: #{gnn_forward.6} parent=5 // pred_check_branch
        %326 = sbr.rel (%p323) target = $region69
      $region68: #{gnn_forward.6} parent=5 // pred_region
        %s327 = ssub.s32 %s12, 1
        %s328 = sand.u32 %s39, 1
        %s329 = sand.u32 %s39, 1
        %s330 = smul.addr %s329, 64
        %s331 = scalar_lea.vmem [#allocation3], %s330
        // Predicated region
        $region70: #{gnn_forward.6} parent=68 // pred_check
          %p332 = pneg %p52
        $region71: #{gnn_forward.6} parent=68 // pred_check_branch
          %334 = sbr.rel (%p332) target = $region73
        $region72: #{gnn_forward.6} parent=68 // pred_region
          _
        $region73: #{gnn_forward.6} parent=68 // pred_fallthru
          _
        %s335 = sand.u32 %s39, 1
        %s336 = sand.u32 %s39, 1
        %s337 = smul.addr %s336, 64
        %s338 = scalar_lea.vmem [#allocation3], %s337
        %p339 = pneg %p52
        %p340 = pneg %p49
        %s341 = smul.u32 16, %s22
        %p342 = scmp.lt.s32.totalorder %s341, 31
        %s343 = scalar_select %p342, %s341, 31
        %s344 = smul.addr %s343, 4
        %s345 = scalar_lea.vmem %s1, %s344
        %p346 = pneg %p78
        %p347 = pneg %p75
        %p348 = pneg %p99
        %p349 = pneg %p96
        %p350 = pneg %p125
        %p351 = pneg %p122
        %s352 = smul.u32 16, %s21
        %p353 = scmp.lt.s32.totalorder %s352, 31
        %s354 = scalar_select %p353, %s352, 31
        %s355 = smul.addr %s354, 8
        %s356 = scalar_lea.vmem %s3, %s355
        %p357 = pneg %p151
        %p358 = pneg %p148
        %p359 = scmp.lt.s32.totalorder %s21, 1
        %s360 = scalar_select %p359, %s21, 1
        %s361 = scalar_lea.vmem %s4, %s360
        %p362 = pneg %p177
        %p363 = pneg %p174
        %p364 = scmp.lt.s32.totalorder %s21, 1
        %s365 = scalar_select %p364, %s21, 1
        %s366 = scalar_lea.vmem %s5, %s365
        %s367 = smul.u32 16, %s21
        %s368 = smul.u32 16, %s22
        %p369 = scmp.lt.s32.totalorder %s368, 31
        %s370 = scalar_select %p369, %s368, 31
        %s371 = smul.addr %s370, 4
        %s372 = scalar_lea.vmem %s1, %s371
        %s373 = smul.u32 16, %s22
        %s374 = smul.u32 16, %s21
        %p375 = scmp.lt.s32.totalorder %s374, 31
        %s376 = scalar_select %p375, %s374, 31
        %s377 = smul.addr %s376, 8
        %s378 = scalar_lea.vmem %s3, %s377
        %s379 = smul.u32 16, %s21
        %p380 = scmp.lt.s32.totalorder %s21, 1
        %s381 = scalar_select %p380, %s21, 1
        %s382 = scalar_lea.vmem %s4, %s381
        %p383 = scmp.lt.s32.totalorder %s21, 1
        %s384 = scalar_select %p383, %s21, 1
        %s385 = scalar_lea.vmem %s5, %s384
        %v386 = vlaneseq
        %v387 = vshrl.u32 %v386, 7
        %v388 = vadd.s32 %v387, 8
        %v389 = vadd.s32 %v387, 16
        %v390 = vadd.s32 %v387, 24
        %v391 = vadd.s32 %v387, 32
        %v392 = vadd.s32 %v387, 40
        %v393 = vadd.s32 %v387, 48
        %v394 = vadd.s32 %v387, 56
        %v395 = vadd.s32 %v387, 64
        %v396 = vadd.s32 %v387, 72
        %v397 = vadd.s32 %v387, 80
        %v398 = vadd.s32 %v387, 88
        %v399 = vadd.s32 %v387, 96
        %v400 = vadd.s32 %v387, 104
        %v401 = vadd.s32 %v387, 112
        %v402 = vadd.s32 %v387, 120
        %s403 = smul.u32 %s21, 128
        %v404 = vstv %s403
        %v405 = vadd.s32 %v387, %v404
        %v406 = vadd.s32 %v388, %v404
        %v407 = vadd.s32 %v389, %v404
        %v408 = vadd.s32 %v390, %v404
        %v409 = vadd.s32 %v391, %v404
        %v410 = vadd.s32 %v392, %v404
        %v411 = vadd.s32 %v393, %v404
        %v412 = vadd.s32 %v394, %v404
        %v413 = vadd.s32 %v395, %v404
        %v414 = vadd.s32 %v396, %v404
        %v415 = vadd.s32 %v397, %v404
        %v416 = vadd.s32 %v398, %v404
        %v417 = vadd.s32 %v399, %v404
        %v418 = vadd.s32 %v400, %v404
        %v419 = vadd.s32 %v401, %v404
        %v420 = vadd.s32 %v402, %v404
        %vm421 = vcmp.lt.s32.totalorder %v405, 256
        %vm422 = vcmp.lt.s32.totalorder %v406, 256
        %vm423 = vcmp.lt.s32.totalorder %v407, 256
        %vm424 = vcmp.lt.s32.totalorder %v408, 256
        %vm425 = vcmp.lt.s32.totalorder %v409, 256
        %vm426 = vcmp.lt.s32.totalorder %v410, 256
        %vm427 = vcmp.lt.s32.totalorder %v411, 256
        %vm428 = vcmp.lt.s32.totalorder %v412, 256
        %vm429 = vcmp.lt.s32.totalorder %v413, 256
        %vm430 = vcmp.lt.s32.totalorder %v414, 256
        %vm431 = vcmp.lt.s32.totalorder %v415, 256
        %vm432 = vcmp.lt.s32.totalorder %v416, 256
        %vm433 = vcmp.lt.s32.totalorder %v417, 256
        %vm434 = vcmp.lt.s32.totalorder %v418, 256
        %vm435 = vcmp.lt.s32.totalorder %v419, 256
        %vm436 = vcmp.lt.s32.totalorder %v420, 256
        %p437 = scmp.eq.s32.totalorder %s22, 0
        // Predicated region
        $region74: #{gnn_forward.6} parent=68 // pred_check
          %p438 = pneg %p437
        $region75: #{gnn_forward.6} parent=68 // pred_check_branch
          %440 = sbr.rel (%p438) target = $region77
        $region76: #{gnn_forward.6} parent=68 // pred_region
          %vm441 = vcmask 261120
          %442 = vst.msk [vmem:[#allocation2] sm:$0xff] %vm441, 0.0
          %443 = vst.msk [vmem:[#allocation2 + $0x8] sm:$0xff] %vm441, 0.0
          %444 = vst.msk [vmem:[#allocation2 + $0x10] sm:$0xff] %vm441, 0.0
          %445 = vst.msk [vmem:[#allocation2 + $0x18] sm:$0xff] %vm441, 0.0
          %446 = vst.msk [vmem:[#allocation2 + $0x20] sm:$0xff] %vm441, 0.0
          %447 = vst.msk [vmem:[#allocation2 + $0x28] sm:$0xff] %vm441, 0.0
          %448 = vst.msk [vmem:[#allocation2 + $0x30] sm:$0xff] %vm441, 0.0
          %449 = vst.msk [vmem:[#allocation2 + $0x38] sm:$0xff] %vm441, 0.0
          %450 = vst.msk [vmem:[#allocation2 + $0x40] sm:$0xff] %vm441, 0.0
          %451 = vst.msk [vmem:[#allocation2 + $0x48] sm:$0xff] %vm441, 0.0
          %452 = vst.msk [vmem:[#allocation2 + $0x50] sm:$0xff] %vm441, 0.0
          %453 = vst.msk [vmem:[#allocation2 + $0x58] sm:$0xff] %vm441, 0.0
          %454 = vst.msk [vmem:[#allocation2 + $0x60] sm:$0xff] %vm441, 0.0
          %455 = vst.msk [vmem:[#allocation2 + $0x68] sm:$0xff] %vm441, 0.0
          %456 = vst.msk [vmem:[#allocation2 + $0x70] sm:$0xff] %vm441, 0.0
          %457 = vst.msk [vmem:[#allocation2 + $0x78] sm:$0xff] %vm441, 0.0
        $region77: #{gnn_forward.6} parent=68 // pred_fallthru
          _
        %v458 = vld [vmem:[#allocation2] sm:$0xff]
        %v459 = vld [vmem:[#allocation2 + $0x8] sm:$0xff]
        %v460 = vld [vmem:[#allocation2 + $0x10] sm:$0xff]
        %v461 = vld [vmem:[#allocation2 + $0x18] sm:$0xff]
        %v462 = vld [vmem:[#allocation2 + $0x20] sm:$0xff]
        %v463 = vld [vmem:[#allocation2 + $0x28] sm:$0xff]
        %v464 = vld [vmem:[#allocation2 + $0x30] sm:$0xff]
        %v465 = vld [vmem:[#allocation2 + $0x38] sm:$0xff]
        %v466 = vld [vmem:[#allocation2 + $0x40] sm:$0xff]
        %v467 = vld [vmem:[#allocation2 + $0x48] sm:$0xff]
        %v468 = vld [vmem:[#allocation2 + $0x50] sm:$0xff]
        %v469 = vld [vmem:[#allocation2 + $0x58] sm:$0xff]
        %v470 = vld [vmem:[#allocation2 + $0x60] sm:$0xff]
        %v471 = vld [vmem:[#allocation2 + $0x68] sm:$0xff]
        %v472 = vld [vmem:[#allocation2 + $0x70] sm:$0xff]
        %v473 = vld [vmem:[#allocation2 + $0x78] sm:$0xff]
        %v474 = vld [vmem:[%s331] sm:$0xf]
        %v475 = vld [vmem:[%s331 + $0x4] sm:$0xf]
        %v476 = vld [vmem:[%s331 + $0x8] sm:$0xf]
        %v477 = vld [vmem:[%s331 + $0xc] sm:$0xf]
        %v478 = vld [vmem:[%s331 + $0x10] sm:$0xf]
        %v479 = vld [vmem:[%s331 + $0x14] sm:$0xf]
        %v480 = vld [vmem:[%s331 + $0x18] sm:$0xf]
        %v481 = vld [vmem:[%s331 + $0x1c] sm:$0xf]
        %v482 = vld [vmem:[%s331 + $0x20] sm:$0xf]
        %v483 = vld [vmem:[%s331 + $0x24] sm:$0xf]
        %v484 = vld [vmem:[%s331 + $0x28] sm:$0xf]
        %v485 = vld [vmem:[%s331 + $0x2c] sm:$0xf]
        %v486 = vld [vmem:[%s331 + $0x30] sm:$0xf]
        %v487 = vld [vmem:[%s331 + $0x34] sm:$0xf]
        %v488 = vld [vmem:[%s331 + $0x38] sm:$0xf]
        %v489 = vld [vmem:[%s331 + $0x3c] sm:$0xf]
        %v490 = vld [vmem:[%s372] sm:$0xf]
        %v491 = vld [vmem:[%s372 + $0x4] sm:$0xf]
        %v492 = vld [vmem:[%s372 + $0x8] sm:$0xf]
        %v493 = vld [vmem:[%s372 + $0xc] sm:$0xf]
        %v494 = vld [vmem:[%s372 + $0x10] sm:$0xf]
        %v495 = vld [vmem:[%s372 + $0x14] sm:$0xf]
        %v496 = vld [vmem:[%s372 + $0x18] sm:$0xf]
        %v497 = vld [vmem:[%s372 + $0x1c] sm:$0xf]
        %v498 = vld [vmem:[%s372 + $0x20] sm:$0xf]
        %v499 = vld [vmem:[%s372 + $0x24] sm:$0xf]
        %v500 = vld [vmem:[%s372 + $0x28] sm:$0xf]
        %v501 = vld [vmem:[%s372 + $0x2c] sm:$0xf]
        %v502 = vld [vmem:[%s372 + $0x30] sm:$0xf]
        %v503 = vld [vmem:[%s372 + $0x34] sm:$0xf]
        %v504 = vld [vmem:[%s372 + $0x38] sm:$0xf]
        %v505 = vld [vmem:[%s372 + $0x3c] sm:$0xf]
        %v522 = vunpack.c.l.b16 %v474
        %v523 = vunpack.c.l.b16 %v475
        %v524 = vunpack.c.l.b16 %v476
        %v525 = vunpack.c.l.b16 %v477
        %v526 = vunpack.c.l.b16 %v478
        %v527 = vunpack.c.l.b16 %v479
        %v528 = vunpack.c.l.b16 %v480
        %v529 = vunpack.c.l.b16 %v481
        %v530 = vunpack.c.l.b16 %v482
        %v531 = vunpack.c.l.b16 %v483
        %v532 = vunpack.c.l.b16 %v484
        %v533 = vunpack.c.l.b16 %v485
        %v534 = vunpack.c.l.b16 %v486
        %v535 = vunpack.c.l.b16 %v487
        %v536 = vunpack.c.l.b16 %v488
        %v537 = vunpack.c.l.b16 %v489
        %v538 = vpack.c.b16 %v523, %v522
        %v539 = vpack.c.b16 %v525, %v524
        %v540 = vpack.c.b16 %v527, %v526
        %v541 = vpack.c.b16 %v529, %v528
        %v542 = vpack.c.b16 %v531, %v530
        %v543 = vpack.c.b16 %v533, %v532
        %v544 = vpack.c.b16 %v535, %v534
        %v545 = vpack.c.b16 %v537, %v536
        %v570 = vunpack.c.l.b16 %v490
        %v571 = vunpack.c.l.b16 %v491
        %v572 = vunpack.c.l.b16 %v492
        %v573 = vunpack.c.l.b16 %v493
        %v574 = vunpack.c.l.b16 %v494
        %v575 = vunpack.c.l.b16 %v495
        %v576 = vunpack.c.l.b16 %v496
        %v577 = vunpack.c.l.b16 %v497
        %v578 = vunpack.c.l.b16 %v498
        %v579 = vunpack.c.l.b16 %v499
        %v580 = vunpack.c.l.b16 %v500
        %v581 = vunpack.c.l.b16 %v501
        %v582 = vunpack.c.l.b16 %v502
        %v583 = vunpack.c.l.b16 %v503
        %v584 = vunpack.c.l.b16 %v504
        %v585 = vunpack.c.l.b16 %v505
        %v586 = vpack.c.b16 %v571, %v570
        %v587 = vpack.c.b16 %v573, %v572
        %v588 = vpack.c.b16 %v575, %v574
        %v589 = vpack.c.b16 %v577, %v576
        %v590 = vpack.c.b16 %v579, %v578
        %v591 = vpack.c.b16 %v581, %v580
        %v592 = vpack.c.b16 %v583, %v582
        %v593 = vpack.c.b16 %v585, %v584
        %602 = vmatpush.bf16.msra.mxu0 %v593
        %603 = vmatpush.bf16.msra.mxu0 %v592
        %604 = vmatpush.bf16.msra.mxu0 %v591
        %605 = vmatpush.bf16.msra.mxu0 %v590
        %606 = vmatpush.bf16.msra.mxu0 %v589
        %607 = vmatpush.bf16.msra.mxu0 %v588
        %608 = vmatpush.bf16.msra.mxu0 %v587
        %609 = vmatpush.bf16.msra.mxu0 %v586
        %610 = vmatmul.bf16.gmra.mxu0 %v538
        %v611 = vpop.f32.mrf.mxu0
        %v612 = vadd.f32 0.0, %v611
        %v613 = vpop.f32.mrf.mxu0
        %v614 = vadd.f32 0.0, %v613
        %615 = vmatmul.bf16.gmra.mxu0 %v539
        %v616 = vpop.f32.mrf.mxu0
        %v617 = vadd.f32 0.0, %v616
        %v618 = vpop.f32.mrf.mxu0
        %v619 = vadd.f32 0.0, %v618
        %620 = vmatmul.bf16.gmra.mxu0 %v540
        %v621 = vpop.f32.mrf.mxu0
        %v622 = vadd.f32 0.0, %v621
        %v623 = vpop.f32.mrf.mxu0
        %v624 = vadd.f32 0.0, %v623
        %625 = vmatmul.bf16.gmra.mxu0 %v541
        %v626 = vpop.f32.mrf.mxu0
        %v627 = vadd.f32 0.0, %v626
        %v628 = vpop.f32.mrf.mxu0
        %v629 = vadd.f32 0.0, %v628
        %630 = vmatmul.bf16.gmra.mxu0 %v542
        %v631 = vpop.f32.mrf.mxu0
        %v632 = vadd.f32 0.0, %v631
        %v633 = vpop.f32.mrf.mxu0
        %v634 = vadd.f32 0.0, %v633
        %635 = vmatmul.bf16.gmra.mxu0 %v543
        %v636 = vpop.f32.mrf.mxu0
        %v637 = vadd.f32 0.0, %v636
        %v638 = vpop.f32.mrf.mxu0
        %v639 = vadd.f32 0.0, %v638
        %640 = vmatmul.bf16.gmra.mxu0 %v544
        %v641 = vpop.f32.mrf.mxu0
        %v642 = vadd.f32 0.0, %v641
        %v643 = vpop.f32.mrf.mxu0
        %v644 = vadd.f32 0.0, %v643
        %645 = vmatmul.bf16.gmra.mxu0 %v545
        %v646 = vpop.f32.mrf.mxu0
        %v647 = vadd.f32 0.0, %v646
        %v648 = vpop.f32.mrf.mxu0
        %v649 = vadd.f32 0.0, %v648
        %650 = vdwg.mxu0
        %v651 = vadd.f32 %v458, %v612
        %v652 = vadd.f32 %v459, %v614
        %v653 = vadd.f32 %v460, %v617
        %v654 = vadd.f32 %v461, %v619
        %v655 = vadd.f32 %v462, %v622
        %v656 = vadd.f32 %v463, %v624
        %v657 = vadd.f32 %v464, %v627
        %v658 = vadd.f32 %v465, %v629
        %v659 = vadd.f32 %v466, %v632
        %v660 = vadd.f32 %v467, %v634
        %v661 = vadd.f32 %v468, %v637
        %v662 = vadd.f32 %v469, %v639
        %v663 = vadd.f32 %v470, %v642
        %v664 = vadd.f32 %v471, %v644
        %v665 = vadd.f32 %v472, %v647
        %v666 = vadd.f32 %v473, %v649
        %vm667 = vcmask 261120
        %668 = vst.msk [vmem:[#allocation2] sm:$0xff] %vm667, %v651
        %669 = vst.msk [vmem:[#allocation2 + $0x8] sm:$0xff] %vm667, %v652
        %670 = vst.msk [vmem:[#allocation2 + $0x10] sm:$0xff] %vm667, %v653
        %671 = vst.msk [vmem:[#allocation2 + $0x18] sm:$0xff] %vm667, %v654
        %672 = vst.msk [vmem:[#allocation2 + $0x20] sm:$0xff] %vm667, %v655
        %673 = vst.msk [vmem:[#allocation2 + $0x28] sm:$0xff] %vm667, %v656
        %674 = vst.msk [vmem:[#allocation2 + $0x30] sm:$0xff] %vm667, %v657
        %675 = vst.msk [vmem:[#allocation2 + $0x38] sm:$0xff] %vm667, %v658
        %676 = vst.msk [vmem:[#allocation2 + $0x40] sm:$0xff] %vm667, %v659
        %677 = vst.msk [vmem:[#allocation2 + $0x48] sm:$0xff] %vm667, %v660
        %678 = vst.msk [vmem:[#allocation2 + $0x50] sm:$0xff] %vm667, %v661
        %679 = vst.msk [vmem:[#allocation2 + $0x58] sm:$0xff] %vm667, %v662
        %680 = vst.msk [vmem:[#allocation2 + $0x60] sm:$0xff] %vm667, %v663
        %681 = vst.msk [vmem:[#allocation2 + $0x68] sm:$0xff] %vm667, %v664
        %682 = vst.msk [vmem:[#allocation2 + $0x70] sm:$0xff] %vm667, %v665
        %683 = vst.msk [vmem:[#allocation2 + $0x78] sm:$0xff] %vm667, %v666
        %p684 = scmp.eq.s32.totalorder %s22, 1
        // Predicated region
        $region78: #{gnn_forward.6} parent=68 // pred_check
          %p685 = pneg %p684
        $region79: #{gnn_forward.6} parent=68 // pred_check_branch
          %687 = sbr.rel (%p685) target = $region81
        $region80: #{gnn_forward.6} parent=68 // pred_region
          %v688 = vld [vmem:[#allocation2] sm:$0xff]
          %v689 = vld [vmem:[#allocation2 + $0x8] sm:$0xff]
          %v690 = vld [vmem:[#allocation2 + $0x10] sm:$0xff]
          %v691 = vld [vmem:[#allocation2 + $0x18] sm:$0xff]
          %v692 = vld [vmem:[#allocation2 + $0x20] sm:$0xff]
          %v693 = vld [vmem:[#allocation2 + $0x28] sm:$0xff]
          %v694 = vld [vmem:[#allocation2 + $0x30] sm:$0xff]
          %v695 = vld [vmem:[#allocation2 + $0x38] sm:$0xff]
          %v696 = vld [vmem:[#allocation2 + $0x40] sm:$0xff]
          %v697 = vld [vmem:[#allocation2 + $0x48] sm:$0xff]
          %v698 = vld [vmem:[#allocation2 + $0x50] sm:$0xff]
          %v699 = vld [vmem:[#allocation2 + $0x58] sm:$0xff]
          %v700 = vld [vmem:[#allocation2 + $0x60] sm:$0xff]
          %v701 = vld [vmem:[#allocation2 + $0x68] sm:$0xff]
          %v702 = vld [vmem:[#allocation2 + $0x70] sm:$0xff]
          %v703 = vld [vmem:[#allocation2 + $0x78] sm:$0xff]
          %v704 = vld [vmem:[%s2] sm:$0x1]
          %v706 = vperm.slane %v704, 0
          %v708 = vadd.f32 %v688, %v706
          %v709 = vadd.f32 %v689, %v706
          %v710 = vadd.f32 %v690, %v706
          %v711 = vadd.f32 %v691, %v706
          %v712 = vadd.f32 %v692, %v706
          %v713 = vadd.f32 %v693, %v706
          %v714 = vadd.f32 %v694, %v706
          %v715 = vadd.f32 %v695, %v706
          %v716 = vadd.f32 %v696, %v706
          %v717 = vadd.f32 %v697, %v706
          %v718 = vadd.f32 %v698, %v706
          %v719 = vadd.f32 %v699, %v706
          %v720 = vadd.f32 %v700, %v706
          %v721 = vadd.f32 %v701, %v706
          %v722 = vadd.f32 %v702, %v706
          %v723 = vadd.f32 %v703, %v706
          %724 = vst.msk [vmem:[%s378] sm:$0xff] %vm667, %v708
          %725 = vst.msk [vmem:[%s378 + $0x8] sm:$0xff] %vm667, %v709
          %726 = vst.msk [vmem:[%s378 + $0x10] sm:$0xff] %vm667, %v710
          %727 = vst.msk [vmem:[%s378 + $0x18] sm:$0xff] %vm667, %v711
          %728 = vst.msk [vmem:[%s378 + $0x20] sm:$0xff] %vm667, %v712
          %729 = vst.msk [vmem:[%s378 + $0x28] sm:$0xff] %vm667, %v713
          %730 = vst.msk [vmem:[%s378 + $0x30] sm:$0xff] %vm667, %v714
          %731 = vst.msk [vmem:[%s378 + $0x38] sm:$0xff] %vm667, %v715
          %732 = vst.msk [vmem:[%s378 + $0x40] sm:$0xff] %vm667, %v716
          %733 = vst.msk [vmem:[%s378 + $0x48] sm:$0xff] %vm667, %v717
          %734 = vst.msk [vmem:[%s378 + $0x50] sm:$0xff] %vm667, %v718
          %735 = vst.msk [vmem:[%s378 + $0x58] sm:$0xff] %vm667, %v719
          %736 = vst.msk [vmem:[%s378 + $0x60] sm:$0xff] %vm667, %v720
          %737 = vst.msk [vmem:[%s378 + $0x68] sm:$0xff] %vm667, %v721
          %738 = vst.msk [vmem:[%s378 + $0x70] sm:$0xff] %vm667, %v722
          %739 = vst.msk [vmem:[%s378 + $0x78] sm:$0xff] %vm667, %v723
          %v740 = vsel %vm421, 1, 0
          %v741 = vsel %vm422, 1, 0
          %v742 = vsel %vm423, 1, 0
          %v743 = vsel %vm424, 1, 0
          %v744 = vsel %vm425, 1, 0
          %v745 = vsel %vm426, 1, 0
          %v746 = vsel %vm427, 1, 0
          %v747 = vsel %vm428, 1, 0
          %v748 = vsel %vm429, 1, 0
          %v749 = vsel %vm430, 1, 0
          %v750 = vsel %vm431, 1, 0
          %v751 = vsel %vm432, 1, 0
          %v752 = vsel %vm433, 1, 0
          %v753 = vsel %vm434, 1, 0
          %v754 = vsel %vm435, 1, 0
          %v755 = vsel %vm436, 1, 0
          %vm756 = vcmp.eq.s32.totalorder %v740, 1
          %vm757 = vcmp.eq.s32.totalorder %v741, 1
          %vm758 = vcmp.eq.s32.totalorder %v742, 1
          %vm759 = vcmp.eq.s32.totalorder %v743, 1
          %vm760 = vcmp.eq.s32.totalorder %v744, 1
          %vm761 = vcmp.eq.s32.totalorder %v745, 1
          %vm762 = vcmp.eq.s32.totalorder %v746, 1
          %vm763 = vcmp.eq.s32.totalorder %v747, 1
          %vm764 = vcmp.eq.s32.totalorder %v748, 1
          %vm765 = vcmp.eq.s32.totalorder %v749, 1
          %vm766 = vcmp.eq.s32.totalorder %v750, 1
          %vm767 = vcmp.eq.s32.totalorder %v751, 1
          %vm768 = vcmp.eq.s32.totalorder %v752, 1
          %vm769 = vcmp.eq.s32.totalorder %v753, 1
          %vm770 = vcmp.eq.s32.totalorder %v754, 1
          %vm771 = vcmp.eq.s32.totalorder %v755, 1
          %v772 = vsel %vm756, %v708, 0.0
          %v773 = vsel %vm757, %v709, 0.0
          %v774 = vsel %vm758, %v710, 0.0
          %v775 = vsel %vm759, %v711, 0.0
          %v776 = vsel %vm760, %v712, 0.0
          %v777 = vsel %vm761, %v713, 0.0
          %v778 = vsel %vm762, %v714, 0.0
          %v779 = vsel %vm763, %v715, 0.0
          %v780 = vsel %vm764, %v716, 0.0
          %v781 = vsel %vm765, %v717, 0.0
          %v782 = vsel %vm766, %v718, 0.0
          %v783 = vsel %vm767, %v719, 0.0
          %v784 = vsel %vm768, %v720, 0.0
          %v785 = vsel %vm769, %v721, 0.0
          %v786 = vsel %vm770, %v722, 0.0
          %v787 = vsel %vm771, %v723, 0.0
          %v788 = vsel %vm667, %v772, 0.0
          %v789 = vsel %vm667, %v773, 0.0
          %v790 = vadd.f32 %v788, %v789
          %v791 = vsel %vm667, %v774, 0.0
          %v792 = vadd.f32 %v790, %v791
          %v793 = vsel %vm667, %v775, 0.0
          %v794 = vadd.f32 %v792, %v793
          %v795 = vsel %vm667, %v776, 0.0
          %v796 = vadd.f32 %v794, %v795
          %v797 = vsel %vm667, %v777, 0.0
          %v798 = vadd.f32 %v796, %v797
          %v799 = vsel %vm667, %v778, 0.0
          %v800 = vadd.f32 %v798, %v799
          %v801 = vsel %vm667, %v779, 0.0
          %v802 = vadd.f32 %v800, %v801
          %v803 = vsel %vm667, %v780, 0.0
          %v804 = vadd.f32 %v802, %v803
          %v805 = vsel %vm667, %v781, 0.0
          %v806 = vadd.f32 %v804, %v805
          %v807 = vsel %vm667, %v782, 0.0
          %v808 = vadd.f32 %v806, %v807
          %v809 = vsel %vm667, %v783, 0.0
          %v810 = vadd.f32 %v808, %v809
          %v811 = vsel %vm667, %v784, 0.0
          %v812 = vadd.f32 %v810, %v811
          %v813 = vsel %vm667, %v785, 0.0
          %v814 = vadd.f32 %v812, %v813
          %v815 = vsel %vm667, %v786, 0.0
          %v816 = vadd.f32 %v814, %v815
          %v817 = vsel %vm667, %v787, 0.0
          %v818 = vadd.f32 %v816, %v817
          %v819 = vrot.slane %v818, 4
          %v820 = vadd.f32 %v818, %v819
          %v821 = vrot.slane %v820, 2
          %v822 = vadd.f32 %v820, %v821
          %v823 = vrot.slane %v822, 1
          %v824 = vadd.f32 %v822, %v823
          %vm825 = vcmask 253952
          %826 = vst.msk [vmem:[%s382] sm:$0x1] %vm825, %v824
          %v827 = vmul.f32 %v772, %v772
          %v828 = vmul.f32 %v773, %v773
          %v829 = vmul.f32 %v774, %v774
          %v830 = vmul.f32 %v775, %v775
          %v831 = vmul.f32 %v776, %v776
          %v832 = vmul.f32 %v777, %v777
          %v833 = vmul.f32 %v778, %v778
          %v834 = vmul.f32 %v779, %v779
          %v835 = vmul.f32 %v780, %v780
          %v836 = vmul.f32 %v781, %v781
          %v837 = vmul.f32 %v782, %v782
          %v838 = vmul.f32 %v783, %v783
          %v839 = vmul.f32 %v784, %v784
          %v840 = vmul.f32 %v785, %v785
          %v841 = vmul.f32 %v786, %v786
          %v842 = vmul.f32 %v787, %v787
          %v843 = vsel %vm667, %v827, 0.0
          %v844 = vsel %vm667, %v828, 0.0
          %v845 = vadd.f32 %v843, %v844
          %v846 = vsel %vm667, %v829, 0.0
          %v847 = vadd.f32 %v845, %v846
          %v848 = vsel %vm667, %v830, 0.0
          %v849 = vadd.f32 %v847, %v848
          %v850 = vsel %vm667, %v831, 0.0
          %v851 = vadd.f32 %v849, %v850
          %v852 = vsel %vm667, %v832, 0.0
          %v853 = vadd.f32 %v851, %v852
          %v854 = vsel %vm667, %v833, 0.0
          %v855 = vadd.f32 %v853, %v854
          %v856 = vsel %vm667, %v834, 0.0
          %v857 = vadd.f32 %v855, %v856
          %v858 = vsel %vm667, %v835, 0.0
          %v859 = vadd.f32 %v857, %v858
          %v860 = vsel %vm667, %v836, 0.0
          %v861 = vadd.f32 %v859, %v860
          %v862 = vsel %vm667, %v837, 0.0
          %v863 = vadd.f32 %v861, %v862
          %v864 = vsel %vm667, %v838, 0.0
          %v865 = vadd.f32 %v863, %v864
          %v866 = vsel %vm667, %v839, 0.0
          %v867 = vadd.f32 %v865, %v866
          %v868 = vsel %vm667, %v840, 0.0
          %v869 = vadd.f32 %v867, %v868
          %v870 = vsel %vm667, %v841, 0.0
          %v871 = vadd.f32 %v869, %v870
          %v872 = vsel %vm667, %v842, 0.0
          %v873 = vadd.f32 %v871, %v872
          %v874 = vrot.slane %v873, 4
          %v875 = vadd.f32 %v873, %v874
          %v876 = vrot.slane %v875, 2
          %v877 = vadd.f32 %v875, %v876
          %v878 = vrot.slane %v877, 1
          %v879 = vadd.f32 %v877, %v878
          %880 = vst.msk [vmem:[%s385] sm:$0x1] %vm825, %v879
        $region81: #{gnn_forward.6} parent=68 // pred_fallthru
          _
        %s881 = smul.u32 16, %s21
        %p882 = scmp.lt.s32.totalorder %s881, 31
        %s883 = scalar_select %p882, %s881, 31
        %s884 = smul.addr %s883, 8
        %s885 = scalar_lea.vmem %s3, %s884
        %p886 = scmp.lt.s32.totalorder %s21, 1
        %s887 = scalar_select %p886, %s21, 1
        %s888 = scalar_lea.vmem %s4, %s887
        %p889 = scmp.lt.s32.totalorder %s21, 1
        %s890 = scalar_select %p889, %s21, 1
        %s891 = scalar_lea.vmem %s5, %s890
        // Predicated region
        $region82: #{gnn_forward.6} parent=68 // pred_check
          %p892 = pneg %p122
        $region83: #{gnn_forward.6} parent=68 // pred_check_branch
          %894 = sbr.rel (%p892) target = $region85
        $region84: #{gnn_forward.6} parent=68 // pred_region
          %s895 = smul.u32 16, %s21
        $region85: #{gnn_forward.6} parent=68 // pred_fallthru
          _
        // Predicated region
        $region86: #{gnn_forward.6} parent=68 // pred_check
          %p896 = pneg %p148
        $region87: #{gnn_forward.6} parent=68 // pred_check_branch
          %898 = sbr.rel (%p896) target = $region89
        $region88: #{gnn_forward.6} parent=68 // pred_region
          _
        $region89: #{gnn_forward.6} parent=68 // pred_fallthru
          _
        // Predicated region
        $region90: #{gnn_forward.6} parent=68 // pred_check
          %p899 = pneg %p174
        $region91: #{gnn_forward.6} parent=68 // pred_check_branch
          %901 = sbr.rel (%p899) target = $region93
        $region92: #{gnn_forward.6} parent=68 // pred_region
          _
        $region93: #{gnn_forward.6} parent=68 // pred_fallthru
          _
      $region69: #{gnn_forward.6} parent=5 // pred_fallthru
        _
      %p902 = scmp.le.s32.totalorder 2, %s12
      // Predicated region
      $region94: #{gnn_forward.6} parent=5 // pred_check
        %p903 = pneg %p902
      $region95: #{gnn_forward.6} parent=5 // pred_check_branch
        %905 = sbr.rel (%p903) target = $region97
      $region96: #{gnn_forward.6} parent=5 // pred_region
        %s906 = ssub.s32 %s12, 2
        // Predicated region
        $region98: #{gnn_forward.6} parent=96 // pred_check
          %p907 = pneg %p128
        $region99: #{gnn_forward.6} parent=96 // pred_check_branch
          %909 = sbr.rel (%p907) target = $region101
        $region100: #{gnn_forward.6} parent=96 // pred_region
          %s910 = smul.u32 16, %s23
          %p911 = scmp.lt.s32.totalorder %s910, 31
          %s912 = scalar_select %p911, %s910, 31
          %s913 = smul.addr %s912, 8
          %s914 = scalar_lea.vmem %s3, %s913
        $region101: #{gnn_forward.6} parent=96 // pred_fallthru
          _
        // Predicated region
        $region102: #{gnn_forward.6} parent=96 // pred_check
          %p915 = pneg %p154
        $region103: #{gnn_forward.6} parent=96 // pred_check_branch
          %917 = sbr.rel (%p915) target = $region105
        $region104: #{gnn_forward.6} parent=96 // pred_region
          %p918 = scmp.lt.s32.totalorder %s23, 1
          %s919 = scalar_select %p918, %s23, 1
          %s920 = scalar_lea.vmem %s4, %s919
        $region105: #{gnn_forward.6} parent=96 // pred_fallthru
          _
        // Predicated region
        $region106: #{gnn_forward.6} parent=96 // pred_check
          %p921 = pneg %p180
        $region107: #{gnn_forward.6} parent=96 // pred_check_branch
          %923 = sbr.rel (%p921) target = $region109
        $region108: #{gnn_forward.6} parent=96 // pred_region
          %p924 = scmp.lt.s32.totalorder %s23, 1
          %s925 = scalar_select %p924, %s23, 1
          %s926 = scalar_lea.vmem %s5, %s925
        $region109: #{gnn_forward.6} parent=96 // pred_fallthru
          _
      $region97: #{gnn_forward.6} parent=5 // pred_fallthru
        _
    $region6: #{gnn_forward.6} parent=1 // loop_footer
      %s16 = sadd.s32 1, %s12
    $region7: #{gnn_forward.6} parent=1 // loop_footer_branch
      %11 = sbr.rel target = $region3
    $region8: #{gnn_forward.6} parent=1 // loop_exit
      _

// kernel: gnn_forward.9
$region0: #{gnn_forward.9}
  #allocation0 [shape = 'u32[]', space=smem, size = 0x4, offset = 0x4, fixed_abs, tag = 'smem constant byte address 0x4 - core index']
  #allocation1 [shape = 'u32[72,128]{1,0:T(1,128)}', space=vmem, size = 0x9000, scoped, tag = 'internal scratch']
  #allocation2 [shape = 'f32[8,32]{1,0:T(8,128)}', space=vmem, size = 0x1000, scoped, tag = 'scratch operand']
  %s0 = inlined_call_operand.vmem [shape: f32[256,32], index: 0, kind: input, shape index: {}]
  %s1 = inlined_call_operand.vmem [shape: f32[1,32], index: 1, kind: input, shape index: {}]
  %s2 = inlined_call_operand.vmem [shape: f32[1,32], index: 2, kind: input, shape index: {}]
  %s3 = inlined_call_operand.vmem [shape: f32[32,128], index: 3, kind: input, shape index: {}]
  %s4 = inlined_call_operand.vmem [shape: f32[1,128], index: 4, kind: input, shape index: {}]
  %s5 = inlined_call_operand.vmem [shape: f32[8,128], index: 5, kind: output, shape index: {}]
  %s6 = sld [smem:[#allocation0]]
  $region61: #{gnn_forward.9} parent=0
    _
  %s8 = ssub.s32 1, %s6
  %s9 = scalar_select 0, %s8, %s6
  loop: start=0, step=1, limit=4
  $region2: #{gnn_forward.9} parent=0 // loop_pre_header
    _
  $region3: #{gnn_forward.9} parent=0 // loop_header
    %s11 = sphi 0, %s15
    %p12 = scmp.ge.s32.totalorder %s11, 4
    %s21 = sphi 0, %s23
    %s24 = sphi 0, %s21
    %s25 = sphi 0, %s24
    %s41 = sphi 0, %s25
    %s45 = sphi 0, %s45
    %s47 = sphi 0, %s45
    %s48 = sphi 0, %s47
    %s62 = sphi 0, %s48
    %s66 = sphi 0, %s66
    %s68 = sphi 0, %s66
    %s69 = sphi 0, %s68
    %s83 = sphi 0, %s69
    %s87 = sphi 0, %s87
    %s89 = sphi 0, %s87
    %s90 = sphi 0, %s89
    %s104 = sphi 0, %s90
    %s108 = sphi 0, %s108
    %s110 = sphi 0, %s108
    %s111 = sphi 0, %s110
    %s125 = sphi 0, %s111
    %s129 = sphi 0, %s129
    %s131 = sphi 0, %s129
    %s132 = sphi 0, %s131
    %s146 = sphi 0, %s132
  $region4: #{gnn_forward.9} parent=0 // loop_header_branch
    %14 = sbr.rel (%p12) target = $region8
  $region5: #{gnn_forward.9} parent=0 // loop_body
    %s16 = ssub.s32 %s11, 1
    %s17 = ssub.s32 %s11, 2
    %s18 = sadd.s32 %s11, 1
    %s19 = ssub.s32 %s11, %s18
    %p20 = scmp.eq.s32.totalorder %s19, 0
    %s22 = sadd.s32 %s21, 1
    %s23 = scalar_select %p20, %s21, %s22
    %p26 = pneg %p20
    %p27 = scmp.eq.s32.totalorder %s11, 1
    %p28 = por %p26, %p27
    %p29 = scmp.ne.s32.totalorder %s21, %s24
    %p30 = scmp.eq.s32.totalorder %s11, 0
    %p31 = por %p29, %p30
    %p32 = scmp.ne.s32.totalorder %s21, %s24
    %p33 = scmp.eq.s32.totalorder %s16, 1
    %p34 = por %p32, %p33
    %p35 = scmp.ne.s32.totalorder %s24, %s25
    %p36 = scmp.eq.s32.totalorder %s16, 0
    %p37 = por %p35, %p36
    %p38 = scmp.ne.s32.totalorder %s24, %s25
    %p39 = scmp.eq.s32.totalorder %s17, 1
    %p40 = por %p38, %p39
    %p42 = scmp.ne.s32.totalorder %s25, %s41
    %p43 = scmp.eq.s32.totalorder %s17, 0
    %p44 = por %p42, %p43
    %s46 = sadd.s32 %s45, 1
    %p49 = scmp.eq.s32.totalorder %s11, 1
    %p50 = scmp.ne.s32.totalorder %s45, %s47
    %p51 = scmp.eq.s32.totalorder %s11, 0
    %p52 = por %p50, %p51
    %p53 = scmp.ne.s32.totalorder %s45, %s47
    %p54 = scmp.eq.s32.totalorder %s16, 1
    %p55 = por %p53, %p54
    %p56 = scmp.ne.s32.totalorder %s47, %s48
    %p57 = scmp.eq.s32.totalorder %s16, 0
    %p58 = por %p56, %p57
    %p59 = scmp.ne.s32.totalorder %s47, %s48
    %p60 = scmp.eq.s32.totalorder %s17, 1
    %p61 = por %p59, %p60
    %p63 = scmp.ne.s32.totalorder %s48, %s62
    %p64 = scmp.eq.s32.totalorder %s17, 0
    %p65 = por %p63, %p64
    %s67 = sadd.s32 %s66, 1
    %p70 = scmp.eq.s32.totalorder %s11, 1
    %p71 = scmp.ne.s32.totalorder %s66, %s68
    %p72 = scmp.eq.s32.totalorder %s11, 0
    %p73 = por %p71, %p72
    %p74 = scmp.ne.s32.totalorder %s66, %s68
    %p75 = scmp.eq.s32.totalorder %s16, 1
    %p76 = por %p74, %p75
    %p77 = scmp.ne.s32.totalorder %s68, %s69
    %p78 = scmp.eq.s32.totalorder %s16, 0
    %p79 = por %p77, %p78
    %p80 = scmp.ne.s32.totalorder %s68, %s69
    %p81 = scmp.eq.s32.totalorder %s17, 1
    %p82 = por %p80, %p81
    %p84 = scmp.ne.s32.totalorder %s69, %s83
    %p85 = scmp.eq.s32.totalorder %s17, 0
    %p86 = por %p84, %p85
    %s88 = sadd.s32 %s87, 1
    %p91 = scmp.eq.s32.totalorder %s11, 1
    %p92 = scmp.ne.s32.totalorder %s87, %s89
    %p93 = scmp.eq.s32.totalorder %s11, 0
    %p94 = por %p92, %p93
    %p95 = scmp.ne.s32.totalorder %s87, %s89
    %p96 = scmp.eq.s32.totalorder %s16, 1
    %p97 = por %p95, %p96
    %p98 = scmp.ne.s32.totalorder %s89, %s90
    %p99 = scmp.eq.s32.totalorder %s16, 0
    %p100 = por %p98, %p99
    %p101 = scmp.ne.s32.totalorder %s89, %s90
    %p102 = scmp.eq.s32.totalorder %s17, 1
    %p103 = por %p101, %p102
    %p105 = scmp.ne.s32.totalorder %s90, %s104
    %p106 = scmp.eq.s32.totalorder %s17, 0
    %p107 = por %p105, %p106
    %s109 = sadd.s32 %s108, 1
    %p112 = scmp.eq.s32.totalorder %s11, 1
    %p113 = scmp.ne.s32.totalorder %s108, %s110
    %p114 = scmp.eq.s32.totalorder %s11, 0
    %p115 = por %p113, %p114
    %p116 = scmp.ne.s32.totalorder %s108, %s110
    %p117 = scmp.eq.s32.totalorder %s16, 1
    %p118 = por %p116, %p117
    %p119 = scmp.ne.s32.totalorder %s110, %s111
    %p120 = scmp.eq.s32.totalorder %s16, 0
    %p121 = por %p119, %p120
    %p122 = scmp.ne.s32.totalorder %s110, %s111
    %p123 = scmp.eq.s32.totalorder %s17, 1
    %p124 = por %p122, %p123
    %p126 = scmp.ne.s32.totalorder %s111, %s125
    %p127 = scmp.eq.s32.totalorder %s17, 0
    %p128 = por %p126, %p127
    %s130 = sadd.s32 %s129, 1
    %p133 = scmp.eq.s32.totalorder %s11, 1
    %p134 = scmp.ne.s32.totalorder %s129, %s131
    %p135 = scmp.eq.s32.totalorder %s11, 0
    %p136 = por %p134, %p135
    %p137 = scmp.ne.s32.totalorder %s129, %s131
    %p138 = scmp.eq.s32.totalorder %s16, 1
    %p139 = por %p137, %p138
    %p140 = scmp.ne.s32.totalorder %s131, %s132
    %p141 = scmp.eq.s32.totalorder %s16, 0
    %p142 = por %p140, %p141
    %p143 = scmp.ne.s32.totalorder %s131, %s132
    %p144 = scmp.eq.s32.totalorder %s17, 1
    %p145 = por %p143, %p144
    %p147 = scmp.ne.s32.totalorder %s132, %s146
    %p148 = scmp.eq.s32.totalorder %s17, 0
    %p149 = por %p147, %p148
    %p150 = scmp.le.s32.totalorder 1, %s11
    %p151 = scmp.lt.s32.totalorder %s11, 3
    %p152 = pnand %p150, %p151
    %p153 = pneg %p152
    // Predicated region
    $region9: #{gnn_forward.9} parent=5 // pred_check
      _
    $region10: #{gnn_forward.9} parent=5 // pred_check_branch
      %155 = sbr.rel (%p152) target = $region12
    $region11: #{gnn_forward.9} parent=5 // pred_region
      %s156 = ssub.s32 %s11, 1
      // Predicated region
      $region13: #{gnn_forward.9} parent=11 // pred_check
        %p157 = pneg %p58
      $region14: #{gnn_forward.9} parent=11 // pred_check_branch
        %159 = sbr.rel (%p157) target = $region16
      $region15: #{gnn_forward.9} parent=11 // pred_region
        _
      $region16: #{gnn_forward.9} parent=11 // pred_fallthru
        _
      // Predicated region
      $region17: #{gnn_forward.9} parent=11 // pred_check
        %p160 = pneg %p79
      $region18: #{gnn_forward.9} parent=11 // pred_check_branch
        %162 = sbr.rel (%p160) target = $region20
      $region19: #{gnn_forward.9} parent=11 // pred_region
        _
      $region20: #{gnn_forward.9} parent=11 // pred_fallthru
        _
      // Predicated region
      $region21: #{gnn_forward.9} parent=11 // pred_check
        %p163 = pneg %p100
      $region22: #{gnn_forward.9} parent=11 // pred_check_branch
        %165 = sbr.rel (%p163) target = $region24
      $region23: #{gnn_forward.9} parent=11 // pred_region
        _
      $region24: #{gnn_forward.9} parent=11 // pred_fallthru
        _
      // Predicated region
      $region25: #{gnn_forward.9} parent=11 // pred_check
        %p166 = pneg %p121
      $region26: #{gnn_forward.9} parent=11 // pred_check_branch
        %168 = sbr.rel (%p166) target = $region28
      $region27: #{gnn_forward.9} parent=11 // pred_region
        _
      $region28: #{gnn_forward.9} parent=11 // pred_fallthru
        _
    $region12: #{gnn_forward.9} parent=5 // pred_fallthru
      _
    %p169 = scmp.lt.s32.totalorder %s11, 2
    // Predicated region
    $region29: #{gnn_forward.9} parent=5 // pred_check
      %p170 = pneg %p169
    $region30: #{gnn_forward.9} parent=5 // pred_check_branch
      %172 = sbr.rel (%p170) target = $region32
    $region31: #{gnn_forward.9} parent=5 // pred_region
      // Predicated region
      $region33: #{gnn_forward.9} parent=31 // pred_check
        %p173 = pneg %p31
      $region34: #{gnn_forward.9} parent=31 // pred_check_branch
        %175 = sbr.rel (%p173) target = $region36
      $region35: #{gnn_forward.9} parent=31 // pred_region
        %s176 = smul.u32 16, %s11
        %p177 = scmp.lt.s32.totalorder %s176, 31
        %s178 = scalar_select %p177, %s176, 31
        %s179 = smul.addr %s178, 8
        %s180 = scalar_lea.vmem %s0, %s179
        %s181 = smul.u32 16, %s11
      $region36: #{gnn_forward.9} parent=31 // pred_fallthru
        _
    $region32: #{gnn_forward.9} parent=5 // pred_fallthru
      _
    %p182 = scmp.le.s32.totalorder 1, %s11
    %p183 = scmp.lt.s32.totalorder %s11, 3
    %p184 = pnand %p182, %p183
    %p185 = pneg %p184
    // Predicated region
    $region37: #{gnn_forward.9} parent=5 // pred_check
      _
    $region38: #{gnn_forward.9} parent=5 // pred_check_branch
      %187 = sbr.rel (%p184) target = $region40
    $region39: #{gnn_forward.9} parent=5 // pred_region
      %s188 = ssub.s32 %s11, 1
      %s189 = smul.u32 16, %s16
      %p190 = scmp.lt.s32.totalorder %s189, 31
      %s191 = scalar_select %p190, %s189, 31
      %s192 = smul.addr %s191, 8
      %s193 = scalar_lea.vmem %s0, %s192
      %p194 = pneg %p37
      %p195 = pneg %p34
      %p196 = pneg %p58
      %p197 = pneg %p55
      %p198 = pneg %p79
      %p199 = pneg %p76
      %p200 = pneg %p100
      %p201 = pneg %p97
      %p202 = pneg %p121
      %p203 = pneg %p118
      %p204 = pneg %p142
      %p205 = pneg %p139
      %s206 = smul.u32 16, %s16
      %p207 = scmp.lt.s32.totalorder %s206, 31
      %s208 = scalar_select %p207, %s206, 31
      %s209 = smul.addr %s208, 8
      %s210 = scalar_lea.vmem %s0, %s209
      %s211 = smul.u32 16, %s16
      %v212 = vlaneseq
      %v213 = vshrl.u32 %v212, 7
      %v214 = vadd.s32 %v213, 8
      %v215 = vadd.s32 %v213, 16
      %v216 = vadd.s32 %v213, 24
      %v217 = vadd.s32 %v213, 32
      %v218 = vadd.s32 %v213, 40
      %v219 = vadd.s32 %v213, 48
      %v220 = vadd.s32 %v213, 56
      %v221 = vadd.s32 %v213, 64
      %v222 = vadd.s32 %v213, 72
      %v223 = vadd.s32 %v213, 80
      %v224 = vadd.s32 %v213, 88
      %v225 = vadd.s32 %v213, 96
      %v226 = vadd.s32 %v213, 104
      %v227 = vadd.s32 %v213, 112
      %v228 = vadd.s32 %v213, 120
      %s229 = smul.u32 %s16, 128
      %v230 = vstv %s229
      %v231 = vadd.s32 %v213, %v230
      %v232 = vadd.s32 %v214, %v230
      %v233 = vadd.s32 %v215, %v230
      %v234 = vadd.s32 %v216, %v230
      %v235 = vadd.s32 %v217, %v230
      %v236 = vadd.s32 %v218, %v230
      %v237 = vadd.s32 %v219, %v230
      %v238 = vadd.s32 %v220, %v230
      %v239 = vadd.s32 %v221, %v230
      %v240 = vadd.s32 %v222, %v230
      %v241 = vadd.s32 %v223, %v230
      %v242 = vadd.s32 %v224, %v230
      %v243 = vadd.s32 %v225, %v230
      %v244 = vadd.s32 %v226, %v230
      %v245 = vadd.s32 %v227, %v230
      %v246 = vadd.s32 %v228, %v230
      %p247 = scmp.eq.s32.totalorder %s16, 0
      // Predicated region
      $region41: #{gnn_forward.9} parent=39 // pred_check
        %p248 = pneg %p247
      $region42: #{gnn_forward.9} parent=39 // pred_check_branch
        %250 = sbr.rel (%p248) target = $region44
      $region43: #{gnn_forward.9} parent=39 // pred_region
        %vm251 = vcmask 261120
        %252 = vst.msk [vmem:[#allocation2] sm:$0xff] %vm251, 0.0
      $region44: #{gnn_forward.9} parent=39 // pred_fallthru
        _
      %v253 = vld [vmem:[%s210] sm:$0xff]
      %v254 = vld [vmem:[%s210 + $0x8] sm:$0xff]
      %v255 = vld [vmem:[%s210 + $0x10] sm:$0xff]
      %v256 = vld [vmem:[%s210 + $0x18] sm:$0xff]
      %v257 = vld [vmem:[%s210 + $0x20] sm:$0xff]
      %v258 = vld [vmem:[%s210 + $0x28] sm:$0xff]
      %v259 = vld [vmem:[%s210 + $0x30] sm:$0xff]
      %v260 = vld [vmem:[%s210 + $0x38] sm:$0xff]
      %v261 = vld [vmem:[%s210 + $0x40] sm:$0xff]
      %v262 = vld [vmem:[%s210 + $0x48] sm:$0xff]
      %v263 = vld [vmem:[%s210 + $0x50] sm:$0xff]
      %v264 = vld [vmem:[%s210 + $0x58] sm:$0xff]
      %v265 = vld [vmem:[%s210 + $0x60] sm:$0xff]
      %v266 = vld [vmem:[%s210 + $0x68] sm:$0xff]
      %v267 = vld [vmem:[%s210 + $0x70] sm:$0xff]
      %v268 = vld [vmem:[%s210 + $0x78] sm:$0xff]
      %v269 = vld [vmem:[%s1] sm:$0x1]
      %v271 = vperm.slane %v269, 0
      %v273 = vmul.f32 %v253, %v271
      %v274 = vmul.f32 %v254, %v271
      %v275 = vmul.f32 %v255, %v271
      %v276 = vmul.f32 %v256, %v271
      %v277 = vmul.f32 %v257, %v271
      %v278 = vmul.f32 %v258, %v271
      %v279 = vmul.f32 %v259, %v271
      %v280 = vmul.f32 %v260, %v271
      %v281 = vmul.f32 %v261, %v271
      %v282 = vmul.f32 %v262, %v271
      %v283 = vmul.f32 %v263, %v271
      %v284 = vmul.f32 %v264, %v271
      %v285 = vmul.f32 %v265, %v271
      %v286 = vmul.f32 %v266, %v271
      %v287 = vmul.f32 %v267, %v271
      %v288 = vmul.f32 %v268, %v271
      %v289 = vld [vmem:[%s2] sm:$0x1]
      %v291 = vperm.slane %v289, 0
      %v293 = vadd.f32 %v273, %v291
      %v294 = vadd.f32 %v274, %v291
      %v295 = vadd.f32 %v275, %v291
      %v296 = vadd.f32 %v276, %v291
      %v297 = vadd.f32 %v277, %v291
      %v298 = vadd.f32 %v278, %v291
      %v299 = vadd.f32 %v279, %v291
      %v300 = vadd.f32 %v280, %v291
      %v301 = vadd.f32 %v281, %v291
      %v302 = vadd.f32 %v282, %v291
      %v303 = vadd.f32 %v283, %v291
      %v304 = vadd.f32 %v284, %v291
      %v305 = vadd.f32 %v285, %v291
      %v306 = vadd.f32 %v286, %v291
      %v307 = vadd.f32 %v287, %v291
      %v308 = vadd.f32 %v288, %v291
      %v309 = vmax.f32 %v293, 0.0
      %v310 = vmax.f32 %v294, 0.0
      %v311 = vmax.f32 %v295, 0.0
      %v312 = vmax.f32 %v296, 0.0
      %v313 = vmax.f32 %v297, 0.0
      %v314 = vmax.f32 %v298, 0.0
      %v315 = vmax.f32 %v299, 0.0
      %v316 = vmax.f32 %v300, 0.0
      %v317 = vmax.f32 %v301, 0.0
      %v318 = vmax.f32 %v302, 0.0
      %v319 = vmax.f32 %v303, 0.0
      %v320 = vmax.f32 %v304, 0.0
      %v321 = vmax.f32 %v305, 0.0
      %v322 = vmax.f32 %v306, 0.0
      %v323 = vmax.f32 %v307, 0.0
      %v324 = vmax.f32 %v308, 0.0
      %vm325 = vcmp.lt.s32.totalorder %v231, 256
      %vm326 = vcmp.lt.s32.totalorder %v232, 256
      %vm327 = vcmp.lt.s32.totalorder %v233, 256
      %vm328 = vcmp.lt.s32.totalorder %v234, 256
      %vm329 = vcmp.lt.s32.totalorder %v235, 256
      %vm330 = vcmp.lt.s32.totalorder %v236, 256
      %vm331 = vcmp.lt.s32.totalorder %v237, 256
      %vm332 = vcmp.lt.s32.totalorder %v238, 256
      %vm333 = vcmp.lt.s32.totalorder %v239, 256
      %vm334 = vcmp.lt.s32.totalorder %v240, 256
      %vm335 = vcmp.lt.s32.totalorder %v241, 256
      %vm336 = vcmp.lt.s32.totalorder %v242, 256
      %vm337 = vcmp.lt.s32.totalorder %v243, 256
      %vm338 = vcmp.lt.s32.totalorder %v244, 256
      %vm339 = vcmp.lt.s32.totalorder %v245, 256
      %vm340 = vcmp.lt.s32.totalorder %v246, 256
      %v341 = vsel %vm325, 1, 0
      %v342 = vsel %vm326, 1, 0
      %v343 = vsel %vm327, 1, 0
      %v344 = vsel %vm328, 1, 0
      %v345 = vsel %vm329, 1, 0
      %v346 = vsel %vm330, 1, 0
      %v347 = vsel %vm331, 1, 0
      %v348 = vsel %vm332, 1, 0
      %v349 = vsel %vm333, 1, 0
      %v350 = vsel %vm334, 1, 0
      %v351 = vsel %vm335, 1, 0
      %v352 = vsel %vm336, 1, 0
      %v353 = vsel %vm337, 1, 0
      %v354 = vsel %vm338, 1, 0
      %v355 = vsel %vm339, 1, 0
      %v356 = vsel %vm340, 1, 0
      %vm357 = vcmp.eq.s32.totalorder %v341, 1
      %vm358 = vcmp.eq.s32.totalorder %v342, 1
      %vm359 = vcmp.eq.s32.totalorder %v343, 1
      %vm360 = vcmp.eq.s32.totalorder %v344, 1
      %vm361 = vcmp.eq.s32.totalorder %v345, 1
      %vm362 = vcmp.eq.s32.totalorder %v346, 1
      %vm363 = vcmp.eq.s32.totalorder %v347, 1
      %vm364 = vcmp.eq.s32.totalorder %v348, 1
      %vm365 = vcmp.eq.s32.totalorder %v349, 1
      %vm366 = vcmp.eq.s32.totalorder %v350, 1
      %vm367 = vcmp.eq.s32.totalorder %v351, 1
      %vm368 = vcmp.eq.s32.totalorder %v352, 1
      %vm369 = vcmp.eq.s32.totalorder %v353, 1
      %vm370 = vcmp.eq.s32.totalorder %v354, 1
      %vm371 = vcmp.eq.s32.totalorder %v355, 1
      %vm372 = vcmp.eq.s32.totalorder %v356, 1
      %v373 = vsel %vm357, %v309, 0.0
      %v374 = vsel %vm358, %v310, 0.0
      %v375 = vsel %vm359, %v311, 0.0
      %v376 = vsel %vm360, %v312, 0.0
      %v377 = vsel %vm361, %v313, 0.0
      %v378 = vsel %vm362, %v314, 0.0
      %v379 = vsel %vm363, %v315, 0.0
      %v380 = vsel %vm364, %v316, 0.0
      %v381 = vsel %vm365, %v317, 0.0
      %v382 = vsel %vm366, %v318, 0.0
      %v383 = vsel %vm367, %v319, 0.0
      %v384 = vsel %vm368, %v320, 0.0
      %v385 = vsel %vm369, %v321, 0.0
      %v386 = vsel %vm370, %v322, 0.0
      %v387 = vsel %vm371, %v323, 0.0
      %v388 = vsel %vm372, %v324, 0.0
      %v389 = vld [vmem:[#allocation2] sm:$0xff]
      %vm390 = vcmask 261120
      %v391 = vsel %vm390, %v373, 0.0
      %v392 = vsel %vm390, %v374, 0.0
      %v393 = vadd.f32 %v391, %v392
      %v394 = vsel %vm390, %v375, 0.0
      %v395 = vadd.f32 %v393, %v394
      %v396 = vsel %vm390, %v376, 0.0
      %v397 = vadd.f32 %v395, %v396
      %v398 = vsel %vm390, %v377, 0.0
      %v399 = vadd.f32 %v397, %v398
      %v400 = vsel %vm390, %v378, 0.0
      %v401 = vadd.f32 %v399, %v400
      %v402 = vsel %vm390, %v379, 0.0
      %v403 = vadd.f32 %v401, %v402
      %v404 = vsel %vm390, %v380, 0.0
      %v405 = vadd.f32 %v403, %v404
      %v406 = vsel %vm390, %v381, 0.0
      %v407 = vadd.f32 %v405, %v406
      %v408 = vsel %vm390, %v382, 0.0
      %v409 = vadd.f32 %v407, %v408
      %v410 = vsel %vm390, %v383, 0.0
      %v411 = vadd.f32 %v409, %v410
      %v412 = vsel %vm390, %v384, 0.0
      %v413 = vadd.f32 %v411, %v412
      %v414 = vsel %vm390, %v385, 0.0
      %v415 = vadd.f32 %v413, %v414
      %v416 = vsel %vm390, %v386, 0.0
      %v417 = vadd.f32 %v415, %v416
      %v418 = vsel %vm390, %v387, 0.0
      %v419 = vadd.f32 %v417, %v418
      %v420 = vsel %vm390, %v388, 0.0
      %v421 = vadd.f32 %v419, %v420
      %v422 = vrot.slane %v421, 4
      %v423 = vadd.f32 %v421, %v422
      %v424 = vrot.slane %v423, 2
      %v425 = vadd.f32 %v423, %v424
      %v426 = vrot.slane %v425, 1
      %v427 = vadd.f32 %v425, %v426
      %v428 = vadd.f32 %v389, %v427
      %429 = vst.msk [vmem:[#allocation2] sm:$0xff] %vm390, %v428
      %p430 = scmp.eq.s32.totalorder %s16, 1
      // Predicated region
      $region45: #{gnn_forward.9} parent=39 // pred_check
        %p431 = pneg %p430
      $region46: #{gnn_forward.9} parent=39 // pred_check_branch
        %433 = sbr.rel (%p431) target = $region48
      $region47: #{gnn_forward.9} parent=39 // pred_region
        %v434 = vld [vmem:[#allocation2] sm:$0xff]
        %v435 = vmul.f32 %v434, 0.00390625
        %v436 = vld [vmem:[%s3] sm:$0xff]
        %v437 = vld [vmem:[%s3 + $0x8] sm:$0xff]
        %v438 = vld [vmem:[%s3 + $0x10] sm:$0xff]
        %v439 = vld [vmem:[%s3 + $0x18] sm:$0xff]
        %v440 = vld [vmem:[%s4] sm:$0x1]
        %v442 = vperm.slane %v440, 0
        %v445 = vsel %vm390, %v435, 0
        %447 = vmatpush.msra.mxu0 0.0
        %448 = vmatpush.msra.mxu0 0.0
        %449 = vmatpush.msra.mxu0 0.0
        %450 = vmatpush.msra.mxu0 0.0
        %451 = vmatpush.msra.mxu0 0.0
        %452 = vmatpush.msra.mxu0 0.0
        %453 = vmatpush.msra.mxu0 0.0
        %454 = vmatpush.msra.mxu0 0.0
        %455 = vmatpush.msra.mxu0 0.0
        %456 = vmatpush.msra.mxu0 0.0
        %457 = vmatpush.msra.mxu0 0.0
        %458 = vmatpush.msra.mxu0 0.0
        %459 = vmatpush.msra.mxu0 %v439
        %460 = vmatpush.msra.mxu0 %v438
        %461 = vmatpush.msra.mxu0 %v437
        %462 = vmatpush.msra.mxu0 %v436
        %463 = vmatmul.f32.gmra.mxu0 %v445
        %v464 = vpop.f32.mrf.mxu0
        %v465 = vadd.f32 %v442, %v464
        %466 = vdwg.mxu0
        %467 = vst [vmem:[%s5] sm:$0xff] %v465
      $region48: #{gnn_forward.9} parent=39 // pred_fallthru
        _
      // Predicated region
      $region49: #{gnn_forward.9} parent=39 // pred_check
        %p468 = pneg %p139
      $region50: #{gnn_forward.9} parent=39 // pred_check_branch
        %470 = sbr.rel (%p468) target = $region52
      $region51: #{gnn_forward.9} parent=39 // pred_region
        _
      $region52: #{gnn_forward.9} parent=39 // pred_fallthru
        _
      // Predicated region
      $region53: #{gnn_forward.9} parent=39 // pred_check
        %p471 = pneg %p139
      $region54: #{gnn_forward.9} parent=39 // pred_check_branch
        %473 = sbr.rel (%p471) target = $region56
      $region55: #{gnn_forward.9} parent=39 // pred_region
        _
      $region56: #{gnn_forward.9} parent=39 // pred_fallthru
        _
    $region40: #{gnn_forward.9} parent=5 // pred_fallthru
      _
    %p474 = scmp.le.s32.totalorder 2, %s11
    // Predicated region
    $region57: #{gnn_forward.9} parent=5 // pred_check
      %p475 = pneg %p474
    $region58: #{gnn_forward.9} parent=5 // pred_check_branch
      %477 = sbr.rel (%p475) target = $region60
    $region59: #{gnn_forward.9} parent=5 // pred_region
      %s478 = ssub.s32 %s11, 2
    $region60: #{gnn_forward.9} parent=5 // pred_fallthru
      _
  $region6: #{gnn_forward.9} parent=0 // loop_footer
    %s15 = sadd.s32 1, %s11
  $region7: #{gnn_forward.9} parent=0 // loop_footer_branch
    %10 = sbr.rel target = $region3
  $region8: #{gnn_forward.9} parent=0 // loop_exit
    _

</llo_original>
